<compile_context>
chip_gen: v6e
topology: v6e:2x2x1
jax: 0.10.0
libtpu: 0.0.40
codegen_flags: <defaults>
</compile_context>

<pallas_src>
import functools

import jax
import jax.numpy as jnp
from jax.experimental import pallas as pl
from jax.experimental.pallas import tpu as pltpu


_INV_SQRT2 = 0.7071067811865476


def _erf(x):
    # Abramowitz & Stegun 7.1.26 rational approximation (max abs err ~1.5e-7).
    # Built only from exp / mul / add / div / where so it is guaranteed to lower in
    # Mosaic; the exp goes to the EUP slot, keeping the VALU free for the depthwise path.
    a1, a2, a3, a4, a5 = 0.254829592, -0.284496736, 1.421413741, -1.453152027, 1.061405429
    pp = 0.3275911
    ax = jnp.abs(x)
    t = 1.0 / (1.0 + pp * ax)
    poly = ((((a5 * t + a4) * t + a3) * t + a2) * t + a1) * t
    e = 1.0 - poly * jnp.exp(-ax * ax)
    return jnp.where(x >= 0.0, e, -e)


def _gelu(x):
    # erf-based GELU, matching PyTorch F.gelu(approximate='none') to ~1e-7.
    return 0.5 * x * (1.0 + _erf(x * _INV_SQRT2))


# --------------------------------------------------------------------------- kernel
def _conv_ffn_kernel(x_ref, wp_ref, bp_ref, wd_ref, bd_ref, wa_ref, ba_ref, msk_ref,
                     o_ref, *, H, W, K):
    """Fused ConvFFN for one image, spatial-on-lanes / channels-on-sublanes layout.

    x_ref  : (1, Cin, HW)    f32  input (flattened H*W on the lane axis)
    wp_ref : (Chid, Cin)     f32  1x1 proj weight
    bp_ref : (Chid, 1)       f32
    wd_ref : (K*K, Chid, 1)  f32  depthwise weight, one (Chid,1) column per tap
    bd_ref : (Chid, 1)       f32
    wa_ref : (Cout, Chid)    f32  1x1 aggr weight
    ba_ref : (Cout, 1)       f32
    msk_ref: (K*K, 1, HW)    f32  per-tap zero-padding boundary mask over flat H*W
    o_ref  : (1, Cout, HW)   f32
    """
    HW = H * W
    p = K // 2

    # ---- 1x1 proj + GELU: (Chid, Cin) @ (Cin, HW) -> (Chid, HW), lane-dense N -------
    y = jnp.dot(wp_ref[...], x_ref[0], preferred_element_type=jnp.float32)
    y = _gelu(y + bp_ref[...])

    # ---- depthwise KxK: one XLU lane rotation (+ boundary mask) per tap --------------
    acc = None
    for dh in range(K):                      # static K*K loop; taps/shifts are static
        for dw in range(K):
            d_h, d_w = dh - p, dw - p
            t = dh * K + dw
            off = d_h * W + d_w              # flat source offset for this tap
            ys = y if off == 0 else pltpu.roll(y, shift=(-off) % HW, axis=1)
            if d_h == 0 and d_w == 0:        # centre tap: mask is all-ones, skip it
                term = ys * wd_ref[t]
            else:
                term = ys * msk_ref[t] * wd_ref[t]
            acc = term if acc is None else acc + term

    # ---- GELU + residual (y is still live; it IS the residual) ------------------------
    z = _gelu(acc + bd_ref[...]) + y

    # ---- 1x1 aggr: (Cout, Chid) @ (Chid, HW) ------------------------------------------
    out = jnp.dot(wa_ref[...], z, preferred_element_type=jnp.float32) + ba_ref[...]
    o_ref[0] = out.astype(o_ref.dtype)


# -------------------------------------------------------------------------- wrapper
def conv_ffn(x_nchw, params, kernel_size):
    """ConvFFN forward. x_nchw: (B, C, H, W) f32. Returns (B, C, H, W) f32."""
    B, C, H, W = x_nchw.shape
    K = int(kernel_size)
    assert K % 2 == 1, "ConvFFN uses 'same' padding => odd kernel size"
    p = K // 2
    Chid = params["proj_w"].shape[0]
    Cout = params["aggr_w"].shape[0]
    HW = H * W
    f32 = jnp.float32

    # NCHW -> (B, C, H*W): free reshape (no transpose / HBM pass).
    x = x_nchw.reshape(B, C, HW).astype(f32)

    # 1x1 conv weights are already (out, in) once the trailing 1x1 dims are dropped.
    wp = params["proj_w"].reshape(Chid, C).astype(f32)
    wa = params["aggr_w"].reshape(Cout, Chid).astype(f32)
    # depthwise weight (Chid, 1, K, K) -> (K*K, Chid, 1): one channel-column per tap.
    wd = params["dwc_w"].reshape(Chid, K * K).T.reshape(K * K, Chid, 1).astype(f32)
    bp = params["proj_b"].reshape(Chid, 1).astype(f32)
    bd = params["dwc_b"].reshape(Chid, 1).astype(f32)
    ba = params["aggr_b"].reshape(Cout, 1).astype(f32)

    # Per-tap zero-padding validity masks over the flat spatial index (shape-only,
    # constant-folded by XLA under jit; avoids in-kernel integer div/mod).
    ii = jnp.arange(HW, dtype=jnp.int32)
    hh, ww = ii // W, ii % W
    masks = []
    for dh in range(K):
        for dw in range(K):
            d_h, d_w = dh - p, dw - p
            masks.append((hh + d_h >= 0) & (hh + d_h < H) &
                         (ww + d_w >= 0) & (ww + d_w < W))
    tap_mask = jnp.stack(masks).astype(f32).reshape(K * K, 1, HW)

    # VMEM footprint: double-buffered in/out blocks + resident weights/masks + f32 temps.
    blk_bytes = 4 * (2 * C * HW + 2 * Cout * HW
                     + 2 * (Chid * C + Cout * Chid + K * K * Chid + 2 * Chid + Cout
                            + K * K * HW)
                     + 12 * Chid * HW)
    vmem_limit = int(min(max(blk_bytes + (8 << 20), 16 << 20), 48 << 20))

    out = pl.pallas_call(
        functools.partial(_conv_ffn_kernel, H=H, W=W, K=K),
        out_shape=jax.ShapeDtypeStruct((B, Cout, HW), f32),
        grid=(B,),
        in_specs=[
            pl.BlockSpec((1, C, HW), lambda b: (b, 0, 0)),
            pl.BlockSpec((Chid, C), lambda b: (0, 0)),
            pl.BlockSpec((Chid, 1), lambda b: (0, 0)),
            pl.BlockSpec((K * K, Chid, 1), lambda b: (0, 0, 0)),
            pl.BlockSpec((Chid, 1), lambda b: (0, 0)),
            pl.BlockSpec((Cout, Chid), lambda b: (0, 0)),
            pl.BlockSpec((Cout, 1), lambda b: (0, 0)),
            pl.BlockSpec((K * K, 1, HW), lambda b: (0, 0, 0)),
        ],
        out_specs=pl.BlockSpec((1, Cout, HW), lambda b: (b, 0, 0)),
        compiler_params=pltpu.CompilerParams(
            dimension_semantics=("parallel",),
            vmem_limit_bytes=vmem_limit),
    )(x, wp, bp, wd, bd, wa, ba, tap_mask)

    # (B, Cout, H*W) -> NCHW: free reshape.
    return out.reshape(B, Cout, H, W)


# -------------------------------------------------------------- pure-JAX f32 reference
def conv_ffn_reference(x_nchw, params, kernel_size):
    from jax.scipy.special import erf as _exact_erf
    gelu = lambda v: 0.5 * v * (1.0 + _exact_erf(v * _INV_SQRT2))

    B, C, H, W = x_nchw.shape
    K = int(kernel_size)
    p = K // 2
    Chid = params["proj_w"].shape[0]
    Cout = params["aggr_w"].shape[0]

    x = jnp.transpose(x_nchw, (0, 2, 3, 1))                                    # NHWC
    wp = params["proj_w"].reshape(Chid, C).T
    y = gelu(x @ wp + params["proj_b"])                                        # (B,H,W,Chid)

    wd = jnp.transpose(params["dwc_w"][:, 0], (1, 2, 0))                       # (K,K,Chid)
    ypad = jnp.pad(y, ((0, 0), (p, p), (p, p), (0, 0)))
    acc = jnp.zeros_like(y)
    for dh in range(K):
        for dw in range(K):
            acc = acc + ypad[:, dh:dh + H, dw:dw + W, :] * wd[dh, dw]
    z = gelu(acc + params["dwc_b"]) + y

    wa = params["aggr_w"].reshape(Cout, Chid).T
    out = z @ wa + params["aggr_b"]
    return jnp.transpose(out, (0, 3, 1, 2))


# ----------------------------------------------------------------------------- main
if __name__ == "__main__":
    dim, exp_ratio, kernel_size = 16, 2, 3
    B, H, W = 2, 16, 16
    hid = dim * exp_ratio

    key = jax.random.PRNGKey(0)
    ks = jax.random.split(key, 7)
    params = dict(
        proj_w=jax.random.normal(ks[0], (hid, dim, 1, 1), jnp.float32) * 0.1,
        proj_b=jax.random.normal(ks[1], (hid,), jnp.float32) * 0.05,
        dwc_w=jax.random.normal(ks[2], (hid, 1, kernel_size, kernel_size), jnp.float32) * 0.1,
        dwc_b=jax.random.normal(ks[3], (hid,), jnp.float32) * 0.05,
        aggr_w=jax.random.normal(ks[4], (dim, hid, 1, 1), jnp.float32) * 0.1,
        aggr_b=jax.random.normal(ks[5], (dim,), jnp.float32) * 0.05,
    )
    x = jax.random.normal(ks[6], (B, dim, H, W), jnp.float32)   # NCHW like the torch module

    fwd = jax.jit(functools.partial(conv_ffn, kernel_size=kernel_size))
    y = fwd(x, params)
    jax.block_until_ready(y)
    assert y.shape == (B, dim, H, W), y.shape
    assert bool(jnp.all(jnp.isfinite(y)))

    y_ref = conv_ffn_reference(x, params, kernel_size)
    rel_err = float(jnp.max(jnp.abs(y - y_ref)) / (jnp.max(jnp.abs(y_ref)) + 1e-8))
    # all-f32 kernel (erf approx |err|<1.5e-7); tolerance covers MXU precision defaults
    assert rel_err < 2e-2, f"mismatch vs reference: rel-max-err={rel_err}"

    print("KERNEL_OK")
</pallas_src>

<mosaic_0001>
module attributes {stable_mosaic.version = 11 : i64} {
  func.func @_conv_ffn_kernel(%arg0: i32, %arg1: memref<1x16x256xf32, #tpu.memory_space<vmem>>, %arg2: memref<32x16xf32, #tpu.memory_space<vmem>>, %arg3: memref<32x1xf32, #tpu.memory_space<vmem>>, %arg4: memref<9x32x1xf32, #tpu.memory_space<vmem>>, %arg5: memref<32x1xf32, #tpu.memory_space<vmem>>, %arg6: memref<16x32xf32, #tpu.memory_space<vmem>>, %arg7: memref<16x1xf32, #tpu.memory_space<vmem>>, %arg8: memref<9x1x256xf32, #tpu.memory_space<vmem>>, %arg9: memref<1x16x256xf32, #tpu.memory_space<vmem>>) attributes {dimension_semantics = [#tpu.dimension_semantics<parallel>], iteration_bounds = array<i64: 2>, scalar_prefetch = 0 : i64, scratch_operands = 0 : i64, tpu.core_type = #tpu.core_type<tc>, window_params = [{transform_indices = @transform_0, window_bounds = array<i64: 1, 16, 256>}, {pipeline_mode = #tpu.pipeline_mode<synchronous>, transform_indices = @transform_1, window_bounds = array<i64: 32, 16>}, {pipeline_mode = #tpu.pipeline_mode<synchronous>, transform_indices = @transform_2, window_bounds = array<i64: 32, 1>}, {pipeline_mode = #tpu.pipeline_mode<synchronous>, transform_indices = @transform_3, window_bounds = array<i64: 9, 32, 1>}, {pipeline_mode = #tpu.pipeline_mode<synchronous>, transform_indices = @transform_4, window_bounds = array<i64: 32, 1>}, {pipeline_mode = #tpu.pipeline_mode<synchronous>, transform_indices = @transform_5, window_bounds = array<i64: 16, 32>}, {pipeline_mode = #tpu.pipeline_mode<synchronous>, transform_indices = @transform_6, window_bounds = array<i64: 16, 1>}, {pipeline_mode = #tpu.pipeline_mode<synchronous>, transform_indices = @transform_7, window_bounds = array<i64: 9, 1, 256>}, {transform_indices = @transform_8, window_bounds = array<i64: 1, 16, 256>}]} {
    %c0 = arith.constant 0 : index
    %c0_0 = arith.constant 0 : index
    %0 = vector.load %arg2[%c0, %c0_0] : memref<32x16xf32, #tpu.memory_space<vmem>>, vector<32x16xf32>
    %c0_1 = arith.constant 0 : index
    %c0_2 = arith.constant 0 : index
    %c0_3 = arith.constant 0 : index
    %1 = vector.load %arg1[%c0_1, %c0_2, %c0_3] : memref<1x16x256xf32, #tpu.memory_space<vmem>>, vector<1x16x256xf32>
    %2 = vector.shape_cast %1 : vector<1x16x256xf32> to vector<16x256xf32>
    %cst = arith.constant dense<0.000000e+00> : vector<32x256xf32>
    %3 = tpu.matmul %0, %2, %cst {dimension_numbers = #tpu.dot_dimension_numbers<[1], [0], [0], [1], [0, 0, 1, 1], [], []>} : vector<32x16xf32>, vector<16x256xf32>, vector<32x256xf32> -> vector<32x256xf32>
    %c0_4 = arith.constant 0 : index
    %c0_5 = arith.constant 0 : index
    %4 = vector.load %arg3[%c0_4, %c0_5] : memref<32x1xf32, #tpu.memory_space<vmem>>, vector<32x1xf32>
    %5 = vector.broadcast %4 : vector<32x1xf32> to vector<32x256xf32>
    %6 = arith.addf %3, %5 : vector<32x256xf32>
    %cst_6 = arith.constant 5.000000e-01 : f32
    %7 = vector.broadcast %cst_6 : f32 to vector<32x256xf32>
    %8 = arith.mulf %7, %6 : vector<32x256xf32>
    %cst_7 = arith.constant 0.707106769 : f32
    %9 = vector.broadcast %cst_7 : f32 to vector<32x256xf32>
    %10 = arith.mulf %6, %9 : vector<32x256xf32>
    %11 = math.absf %10 : vector<32x256xf32>
    %cst_8 = arith.constant 0.327591091 : f32
    %12 = vector.broadcast %cst_8 : f32 to vector<32x256xf32>
    %13 = arith.mulf %12, %11 : vector<32x256xf32>
    %cst_9 = arith.constant 1.000000e+00 : f32
    %14 = vector.broadcast %cst_9 : f32 to vector<32x256xf32>
    %15 = arith.addf %14, %13 : vector<32x256xf32>
    %cst_10 = arith.constant 1.000000e+00 : f32
    %16 = vector.broadcast %cst_10 : f32 to vector<32x256xf32>
    %17 = arith.divf %16, %15 : vector<32x256xf32>
    %cst_11 = arith.constant 1.06140542 : f32
    %18 = vector.broadcast %cst_11 : f32 to vector<32x256xf32>
    %19 = arith.mulf %18, %17 : vector<32x256xf32>
    %cst_12 = arith.constant -1.45315206 : f32
    %20 = vector.broadcast %cst_12 : f32 to vector<32x256xf32>
    %21 = arith.addf %19, %20 : vector<32x256xf32>
    %22 = arith.mulf %21, %17 : vector<32x256xf32>
    %cst_13 = arith.constant 1.42141378 : f32
    %23 = vector.broadcast %cst_13 : f32 to vector<32x256xf32>
    %24 = arith.addf %22, %23 : vector<32x256xf32>
    %25 = arith.mulf %24, %17 : vector<32x256xf32>
    %cst_14 = arith.constant -0.284496725 : f32
    %26 = vector.broadcast %cst_14 : f32 to vector<32x256xf32>
    %27 = arith.addf %25, %26 : vector<32x256xf32>
    %28 = arith.mulf %27, %17 : vector<32x256xf32>
    %cst_15 = arith.constant 0.254829586 : f32
    %29 = vector.broadcast %cst_15 : f32 to vector<32x256xf32>
    %30 = arith.addf %28, %29 : vector<32x256xf32>
    %31 = arith.mulf %30, %17 : vector<32x256xf32>
    %cst_16 = arith.constant 0.000000e+00 : f32
    %32 = vector.broadcast %cst_16 : f32 to vector<32x256xf32>
    %33 = arith.subf %32, %11 : vector<32x256xf32>
    %34 = arith.mulf %33, %11 : vector<32x256xf32>
    %35 = math.exp %34 : vector<32x256xf32>
    %36 = arith.mulf %31, %35 : vector<32x256xf32>
    %cst_17 = arith.constant 1.000000e+00 : f32
    %37 = vector.broadcast %cst_17 : f32 to vector<32x256xf32>
    %38 = arith.subf %37, %36 : vector<32x256xf32>
    %cst_18 = arith.constant 0.000000e+00 : f32
    %39 = vector.broadcast %cst_18 : f32 to vector<32x256xf32>
    %40 = arith.cmpf oge, %10, %39 : vector<32x256xf32>
    %cst_19 = arith.constant 0.000000e+00 : f32
    %41 = vector.broadcast %cst_19 : f32 to vector<32x256xf32>
    %42 = arith.subf %41, %38 : vector<32x256xf32>
    %43 = arith.select %40, %38, %42 : vector<32x256xi1>, vector<32x256xf32>
    %cst_20 = arith.constant 1.000000e+00 : f32
    %44 = vector.broadcast %cst_20 : f32 to vector<32x256xf32>
    %45 = arith.addf %44, %43 : vector<32x256xf32>
    %46 = arith.mulf %8, %45 : vector<32x256xf32>
    %c17_i32 = arith.constant 17 : i32
    %47 = tpu.dynamic_rotate %46 by %c17_i32 dim 1 : vector<32x256xf32>, i32 -> vector<32x256xf32>
    %c0_21 = arith.constant 0 : index
    %c0_22 = arith.constant 0 : index
    %c0_23 = arith.constant 0 : index
    %48 = vector.load %arg8[%c0_21, %c0_22, %c0_23] : memref<9x1x256xf32, #tpu.memory_space<vmem>>, vector<1x1x256xf32>
    %49 = vector.shape_cast %48 : vector<1x1x256xf32> to vector<1x256xf32>
    %50 = vector.broadcast %49 : vector<1x256xf32> to vector<32x256xf32>
    %51 = arith.mulf %47, %50 : vector<32x256xf32>
    %c0_24 = arith.constant 0 : index
    %c0_25 = arith.constant 0 : index
    %c0_26 = arith.constant 0 : index
    %52 = vector.load %arg4[%c0_24, %c0_25, %c0_26] : memref<9x32x1xf32, #tpu.memory_space<vmem>>, vector<1x32x1xf32>
    %53 = vector.shape_cast %52 : vector<1x32x1xf32> to vector<32x1xf32>
    %54 = vector.broadcast %53 : vector<32x1xf32> to vector<32x256xf32>
    %55 = arith.mulf %51, %54 : vector<32x256xf32>
    %c16_i32 = arith.constant 16 : i32
    %56 = tpu.dynamic_rotate %46 by %c16_i32 dim 1 : vector<32x256xf32>, i32 -> vector<32x256xf32>
    %c1 = arith.constant 1 : index
    %c0_27 = arith.constant 0 : index
    %c0_28 = arith.constant 0 : index
    %57 = vector.load %arg8[%c1, %c0_27, %c0_28] : memref<9x1x256xf32, #tpu.memory_space<vmem>>, vector<1x1x256xf32>
    %58 = vector.shape_cast %57 : vector<1x1x256xf32> to vector<1x256xf32>
    %59 = vector.broadcast %58 : vector<1x256xf32> to vector<32x256xf32>
    %60 = arith.mulf %56, %59 : vector<32x256xf32>
    %c1_29 = arith.constant 1 : index
    %c0_30 = arith.constant 0 : index
    %c0_31 = arith.constant 0 : index
    %61 = vector.load %arg4[%c1_29, %c0_30, %c0_31] : memref<9x32x1xf32, #tpu.memory_space<vmem>>, vector<1x32x1xf32>
    %62 = vector.shape_cast %61 : vector<1x32x1xf32> to vector<32x1xf32>
    %63 = vector.broadcast %62 : vector<32x1xf32> to vector<32x256xf32>
    %64 = arith.mulf %60, %63 : vector<32x256xf32>
    %65 = arith.addf %55, %64 : vector<32x256xf32>
    %c15_i32 = arith.constant 15 : i32
    %66 = tpu.dynamic_rotate %46 by %c15_i32 dim 1 : vector<32x256xf32>, i32 -> vector<32x256xf32>
    %c2 = arith.constant 2 : index
    %c0_32 = arith.constant 0 : index
    %c0_33 = arith.constant 0 : index
    %67 = vector.load %arg8[%c2, %c0_32, %c0_33] : memref<9x1x256xf32, #tpu.memory_space<vmem>>, vector<1x1x256xf32>
    %68 = vector.shape_cast %67 : vector<1x1x256xf32> to vector<1x256xf32>
    %69 = vector.broadcast %68 : vector<1x256xf32> to vector<32x256xf32>
    %70 = arith.mulf %66, %69 : vector<32x256xf32>
    %c2_34 = arith.constant 2 : index
    %c0_35 = arith.constant 0 : index
    %c0_36 = arith.constant 0 : index
    %71 = vector.load %arg4[%c2_34, %c0_35, %c0_36] : memref<9x32x1xf32, #tpu.memory_space<vmem>>, vector<1x32x1xf32>
    %72 = vector.shape_cast %71 : vector<1x32x1xf32> to vector<32x1xf32>
    %73 = vector.broadcast %72 : vector<32x1xf32> to vector<32x256xf32>
    %74 = arith.mulf %70, %73 : vector<32x256xf32>
    %75 = arith.addf %65, %74 : vector<32x256xf32>
    %c1_i32 = arith.constant 1 : i32
    %76 = tpu.dynamic_rotate %46 by %c1_i32 dim 1 : vector<32x256xf32>, i32 -> vector<32x256xf32>
    %c3 = arith.constant 3 : index
    %c0_37 = arith.constant 0 : index
    %c0_38 = arith.constant 0 : index
    %77 = vector.load %arg8[%c3, %c0_37, %c0_38] : memref<9x1x256xf32, #tpu.memory_space<vmem>>, vector<1x1x256xf32>
    %78 = vector.shape_cast %77 : vector<1x1x256xf32> to vector<1x256xf32>
    %79 = vector.broadcast %78 : vector<1x256xf32> to vector<32x256xf32>
    %80 = arith.mulf %76, %79 : vector<32x256xf32>
    %c3_39 = arith.constant 3 : index
    %c0_40 = arith.constant 0 : index
    %c0_41 = arith.constant 0 : index
    %81 = vector.load %arg4[%c3_39, %c0_40, %c0_41] : memref<9x32x1xf32, #tpu.memory_space<vmem>>, vector<1x32x1xf32>
    %82 = vector.shape_cast %81 : vector<1x32x1xf32> to vector<32x1xf32>
    %83 = vector.broadcast %82 : vector<32x1xf32> to vector<32x256xf32>
    %84 = arith.mulf %80, %83 : vector<32x256xf32>
    %85 = arith.addf %75, %84 : vector<32x256xf32>
    %c4 = arith.constant 4 : index
    %c0_42 = arith.constant 0 : index
    %c0_43 = arith.constant 0 : index
    %86 = vector.load %arg4[%c4, %c0_42, %c0_43] : memref<9x32x1xf32, #tpu.memory_space<vmem>>, vector<1x32x1xf32>
    %87 = vector.shape_cast %86 : vector<1x32x1xf32> to vector<32x1xf32>
    %88 = vector.broadcast %87 : vector<32x1xf32> to vector<32x256xf32>
    %89 = arith.mulf %46, %88 : vector<32x256xf32>
    %90 = arith.addf %85, %89 : vector<32x256xf32>
    %c255_i32 = arith.constant 255 : i32
    %91 = tpu.dynamic_rotate %46 by %c255_i32 dim 1 : vector<32x256xf32>, i32 -> vector<32x256xf32>
    %c5 = arith.constant 5 : index
    %c0_44 = arith.constant 0 : index
    %c0_45 = arith.constant 0 : index
    %92 = vector.load %arg8[%c5, %c0_44, %c0_45] : memref<9x1x256xf32, #tpu.memory_space<vmem>>, vector<1x1x256xf32>
    %93 = vector.shape_cast %92 : vector<1x1x256xf32> to vector<1x256xf32>
    %94 = vector.broadcast %93 : vector<1x256xf32> to vector<32x256xf32>
    %95 = arith.mulf %91, %94 : vector<32x256xf32>
    %c5_46 = arith.constant 5 : index
    %c0_47 = arith.constant 0 : index
    %c0_48 = arith.constant 0 : index
    %96 = vector.load %arg4[%c5_46, %c0_47, %c0_48] : memref<9x32x1xf32, #tpu.memory_space<vmem>>, vector<1x32x1xf32>
    %97 = vector.shape_cast %96 : vector<1x32x1xf32> to vector<32x1xf32>
    %98 = vector.broadcast %97 : vector<32x1xf32> to vector<32x256xf32>
    %99 = arith.mulf %95, %98 : vector<32x256xf32>
    %100 = arith.addf %90, %99 : vector<32x256xf32>
    %c241_i32 = arith.constant 241 : i32
    %101 = tpu.dynamic_rotate %46 by %c241_i32 dim 1 : vector<32x256xf32>, i32 -> vector<32x256xf32>
    %c6 = arith.constant 6 : index
    %c0_49 = arith.constant 0 : index
    %c0_50 = arith.constant 0 : index
    %102 = vector.load %arg8[%c6, %c0_49, %c0_50] : memref<9x1x256xf32, #tpu.memory_space<vmem>>, vector<1x1x256xf32>
    %103 = vector.shape_cast %102 : vector<1x1x256xf32> to vector<1x256xf32>
    %104 = vector.broadcast %103 : vector<1x256xf32> to vector<32x256xf32>
    %105 = arith.mulf %101, %104 : vector<32x256xf32>
    %c6_51 = arith.constant 6 : index
    %c0_52 = arith.constant 0 : index
    %c0_53 = arith.constant 0 : index
    %106 = vector.load %arg4[%c6_51, %c0_52, %c0_53] : memref<9x32x1xf32, #tpu.memory_space<vmem>>, vector<1x32x1xf32>
    %107 = vector.shape_cast %106 : vector<1x32x1xf32> to vector<32x1xf32>
    %108 = vector.broadcast %107 : vector<32x1xf32> to vector<32x256xf32>
    %109 = arith.mulf %105, %108 : vector<32x256xf32>
    %110 = arith.addf %100, %109 : vector<32x256xf32>
    %c240_i32 = arith.constant 240 : i32
    %111 = tpu.dynamic_rotate %46 by %c240_i32 dim 1 : vector<32x256xf32>, i32 -> vector<32x256xf32>
    %c7 = arith.constant 7 : index
    %c0_54 = arith.constant 0 : index
    %c0_55 = arith.constant 0 : index
    %112 = vector.load %arg8[%c7, %c0_54, %c0_55] : memref<9x1x256xf32, #tpu.memory_space<vmem>>, vector<1x1x256xf32>
    %113 = vector.shape_cast %112 : vector<1x1x256xf32> to vector<1x256xf32>
    %114 = vector.broadcast %113 : vector<1x256xf32> to vector<32x256xf32>
    %115 = arith.mulf %111, %114 : vector<32x256xf32>
    %c7_56 = arith.constant 7 : index
    %c0_57 = arith.constant 0 : index
    %c0_58 = arith.constant 0 : index
    %116 = vector.load %arg4[%c7_56, %c0_57, %c0_58] : memref<9x32x1xf32, #tpu.memory_space<vmem>>, vector<1x32x1xf32>
    %117 = vector.shape_cast %116 : vector<1x32x1xf32> to vector<32x1xf32>
    %118 = vector.broadcast %117 : vector<32x1xf32> to vector<32x256xf32>
    %119 = arith.mulf %115, %118 : vector<32x256xf32>
    %120 = arith.addf %110, %119 : vector<32x256xf32>
    %c239_i32 = arith.constant 239 : i32
    %121 = tpu.dynamic_rotate %46 by %c239_i32 dim 1 : vector<32x256xf32>, i32 -> vector<32x256xf32>
    %c8 = arith.constant 8 : index
    %c0_59 = arith.constant 0 : index
    %c0_60 = arith.constant 0 : index
    %122 = vector.load %arg8[%c8, %c0_59, %c0_60] : memref<9x1x256xf32, #tpu.memory_space<vmem>>, vector<1x1x256xf32>
    %123 = vector.shape_cast %122 : vector<1x1x256xf32> to vector<1x256xf32>
    %124 = vector.broadcast %123 : vector<1x256xf32> to vector<32x256xf32>
    %125 = arith.mulf %121, %124 : vector<32x256xf32>
    %c8_61 = arith.constant 8 : index
    %c0_62 = arith.constant 0 : index
    %c0_63 = arith.constant 0 : index
    %126 = vector.load %arg4[%c8_61, %c0_62, %c0_63] : memref<9x32x1xf32, #tpu.memory_space<vmem>>, vector<1x32x1xf32>
    %127 = vector.shape_cast %126 : vector<1x32x1xf32> to vector<32x1xf32>
    %128 = vector.broadcast %127 : vector<32x1xf32> to vector<32x256xf32>
    %129 = arith.mulf %125, %128 : vector<32x256xf32>
    %130 = arith.addf %120, %129 : vector<32x256xf32>
    %c0_64 = arith.constant 0 : index
    %c0_65 = arith.constant 0 : index
    %131 = vector.load %arg5[%c0_64, %c0_65] : memref<32x1xf32, #tpu.memory_space<vmem>>, vector<32x1xf32>
    %132 = vector.broadcast %131 : vector<32x1xf32> to vector<32x256xf32>
    %133 = arith.addf %130, %132 : vector<32x256xf32>
    %cst_66 = arith.constant 5.000000e-01 : f32
    %134 = vector.broadcast %cst_66 : f32 to vector<32x256xf32>
    %135 = arith.mulf %134, %133 : vector<32x256xf32>
    %cst_67 = arith.constant 0.707106769 : f32
    %136 = vector.broadcast %cst_67 : f32 to vector<32x256xf32>
    %137 = arith.mulf %133, %136 : vector<32x256xf32>
    %138 = math.absf %137 : vector<32x256xf32>
    %cst_68 = arith.constant 0.327591091 : f32
    %139 = vector.broadcast %cst_68 : f32 to vector<32x256xf32>
    %140 = arith.mulf %139, %138 : vector<32x256xf32>
    %cst_69 = arith.constant 1.000000e+00 : f32
    %141 = vector.broadcast %cst_69 : f32 to vector<32x256xf32>
    %142 = arith.addf %141, %140 : vector<32x256xf32>
    %cst_70 = arith.constant 1.000000e+00 : f32
    %143 = vector.broadcast %cst_70 : f32 to vector<32x256xf32>
    %144 = arith.divf %143, %142 : vector<32x256xf32>
    %cst_71 = arith.constant 1.06140542 : f32
    %145 = vector.broadcast %cst_71 : f32 to vector<32x256xf32>
    %146 = arith.mulf %145, %144 : vector<32x256xf32>
    %cst_72 = arith.constant -1.45315206 : f32
    %147 = vector.broadcast %cst_72 : f32 to vector<32x256xf32>
    %148 = arith.addf %146, %147 : vector<32x256xf32>
    %149 = arith.mulf %148, %144 : vector<32x256xf32>
    %cst_73 = arith.constant 1.42141378 : f32
    %150 = vector.broadcast %cst_73 : f32 to vector<32x256xf32>
    %151 = arith.addf %149, %150 : vector<32x256xf32>
    %152 = arith.mulf %151, %144 : vector<32x256xf32>
    %cst_74 = arith.constant -0.284496725 : f32
    %153 = vector.broadcast %cst_74 : f32 to vector<32x256xf32>
    %154 = arith.addf %152, %153 : vector<32x256xf32>
    %155 = arith.mulf %154, %144 : vector<32x256xf32>
    %cst_75 = arith.constant 0.254829586 : f32
    %156 = vector.broadcast %cst_75 : f32 to vector<32x256xf32>
    %157 = arith.addf %155, %156 : vector<32x256xf32>
    %158 = arith.mulf %157, %144 : vector<32x256xf32>
    %cst_76 = arith.constant 0.000000e+00 : f32
    %159 = vector.broadcast %cst_76 : f32 to vector<32x256xf32>
    %160 = arith.subf %159, %138 : vector<32x256xf32>
    %161 = arith.mulf %160, %138 : vector<32x256xf32>
    %162 = math.exp %161 : vector<32x256xf32>
    %163 = arith.mulf %158, %162 : vector<32x256xf32>
    %cst_77 = arith.constant 1.000000e+00 : f32
    %164 = vector.broadcast %cst_77 : f32 to vector<32x256xf32>
    %165 = arith.subf %164, %163 : vector<32x256xf32>
    %cst_78 = arith.constant 0.000000e+00 : f32
    %166 = vector.broadcast %cst_78 : f32 to vector<32x256xf32>
    %167 = arith.cmpf oge, %137, %166 : vector<32x256xf32>
    %cst_79 = arith.constant 0.000000e+00 : f32
    %168 = vector.broadcast %cst_79 : f32 to vector<32x256xf32>
    %169 = arith.subf %168, %165 : vector<32x256xf32>
    %170 = arith.select %167, %165, %169 : vector<32x256xi1>, vector<32x256xf32>
    %cst_80 = arith.constant 1.000000e+00 : f32
    %171 = vector.broadcast %cst_80 : f32 to vector<32x256xf32>
    %172 = arith.addf %171, %170 : vector<32x256xf32>
    %173 = arith.mulf %135, %172 : vector<32x256xf32>
    %174 = arith.addf %173, %46 : vector<32x256xf32>
    %c0_81 = arith.constant 0 : index
    %c0_82 = arith.constant 0 : index
    %175 = vector.load %arg6[%c0_81, %c0_82] : memref<16x32xf32, #tpu.memory_space<vmem>>, vector<16x32xf32>
    %cst_83 = arith.constant dense<0.000000e+00> : vector<16x256xf32>
    %176 = tpu.matmul %175, %174, %cst_83 {dimension_numbers = #tpu.dot_dimension_numbers<[1], [0], [0], [1], [0, 0, 1, 1], [], []>} : vector<16x32xf32>, vector<32x256xf32>, vector<16x256xf32> -> vector<16x256xf32>
    %c0_84 = arith.constant 0 : index
    %c0_85 = arith.constant 0 : index
    %177 = vector.load %arg7[%c0_84, %c0_85] : memref<16x1xf32, #tpu.memory_space<vmem>>, vector<16x1xf32>
    %178 = vector.broadcast %177 : vector<16x1xf32> to vector<16x256xf32>
    %179 = arith.addf %176, %178 : vector<16x256xf32>
    %c0_86 = arith.constant 0 : index
    %c0_87 = arith.constant 0 : index
    %c0_88 = arith.constant 0 : index
    %180 = vector.load %arg9[%c0_86, %c0_87, %c0_88] : memref<1x16x256xf32, #tpu.memory_space<vmem>>, vector<1x16x256xf32>
    %181 = vector.shape_cast %180 : vector<1x16x256xf32> to vector<16x256xf32>
    %182 = vector.shape_cast %179 : vector<16x256xf32> to vector<1x16x256xf32>
    tpu.vector_store %arg9[%c0_86, %c0_87, %c0_88], %182 {strides = array<i32>} : memref<1x16x256xf32, #tpu.memory_space<vmem>>, vector<1x16x256xf32>,
    return
  }
  func.func @transform_0(%arg0: i32) -> (i32, i32, i32) {
    %c0_i32 = arith.constant 0 : i32
    %c0_i32_0 = arith.constant 0 : i32
    %c0_i32_1 = arith.constant 0 : i32
    return %arg0, %c0_i32, %c0_i32_0 : i32, i32, i32
  }
  func.func @transform_1(%arg0: i32) -> (i32, i32) {
    %c0_i32 = arith.constant 0 : i32
    %c0_i32_0 = arith.constant 0 : i32
    %c0_i32_1 = arith.constant 0 : i32
    return %c0_i32, %c0_i32_0 : i32, i32
  }
  func.func @transform_2(%arg0: i32) -> (i32, i32) {
    %c0_i32 = arith.constant 0 : i32
    %c0_i32_0 = arith.constant 0 : i32
    %c0_i32_1 = arith.constant 0 : i32
    return %c0_i32, %c0_i32_0 : i32, i32
  }
  func.func @transform_3(%arg0: i32) -> (i32, i32, i32) {
    %c0_i32 = arith.constant 0 : i32
    %c0_i32_0 = arith.constant 0 : i32
    %c0_i32_1 = arith.constant 0 : i32
    %c0_i32_2 = arith.constant 0 : i32
    return %c0_i32, %c0_i32_0, %c0_i32_1 : i32, i32, i32
  }
  func.func @transform_4(%arg0: i32) -> (i32, i32) {
    %c0_i32 = arith.constant 0 : i32
    %c0_i32_0 = arith.constant 0 : i32
    %c0_i32_1 = arith.constant 0 : i32
    return %c0_i32, %c0_i32_0 : i32, i32
  }
  func.func @transform_5(%arg0: i32) -> (i32, i32) {
    %c0_i32 = arith.constant 0 : i32
    %c0_i32_0 = arith.constant 0 : i32
    %c0_i32_1 = arith.constant 0 : i32
    return %c0_i32, %c0_i32_0 : i32, i32
  }
  func.func @transform_6(%arg0: i32) -> (i32, i32) {
    %c0_i32 = arith.constant 0 : i32
    %c0_i32_0 = arith.constant 0 : i32
    %c0_i32_1 = arith.constant 0 : i32
    return %c0_i32, %c0_i32_0 : i32, i32
  }
  func.func @transform_7(%arg0: i32) -> (i32, i32, i32) {
    %c0_i32 = arith.constant 0 : i32
    %c0_i32_0 = arith.constant 0 : i32
    %c0_i32_1 = arith.constant 0 : i32
    %c0_i32_2 = arith.constant 0 : i32
    return %c0_i32, %c0_i32_0, %c0_i32_1 : i32, i32, i32
  }
  func.func @transform_8(%arg0: i32) -> (i32, i32, i32) {
    %c0_i32 = arith.constant 0 : i32
    %c0_i32_0 = arith.constant 0 : i32
    %c0_i32_1 = arith.constant 0 : i32
    return %arg0, %c0_i32, %c0_i32_0 : i32, i32, i32
  }
}

</mosaic_0001>

<llo_original>
// kernel: conv_ffn.1
$region0: #{conv_ffn.1}
  #allocation0 [shape = 'u32[]', space=smem, size = 0x4, offset = 0x4, fixed_abs, tag = 'smem constant byte address 0x4 - core index']
  #allocation1 [shape = 'u32[144,128]{1,0:T(1,128)}', space=vmem, size = 0x12000, scoped, tag = 'internal scratch']
  %s0 = inlined_call_operand.vmem [shape: f32[2,16,256], index: 0, kind: input, shape index: {}]
  %s1 = inlined_call_operand.vmem [shape: f32[32,16], index: 1, kind: input, shape index: {}]
  %s2 = inlined_call_operand.vmem [shape: f32[32,1], index: 2, kind: input, shape index: {}]
  %s3 = inlined_call_operand.vmem [shape: f32[9,32,1], index: 3, kind: input, shape index: {}]
  %s4 = inlined_call_operand.vmem [shape: f32[32,1], index: 4, kind: input, shape index: {}]
  %s5 = inlined_call_operand.vmem [shape: f32[16,32], index: 5, kind: input, shape index: {}]
  %s6 = inlined_call_operand.vmem [shape: f32[16,1], index: 6, kind: input, shape index: {}]
  %s7 = inlined_call_operand.vmem [shape: f32[9,1,256], index: 7, kind: input, shape index: {}]
  %s8 = inlined_call_operand.vmem [shape: f32[2,16,256], index: 8, kind: output, shape index: {}]
  %s9 = sld [smem:[#allocation0]]
  $region65: #{conv_ffn.1} parent=0
    _
  %s11 = ssub.s32 1, %s9
  %s12 = scalar_select 0, %s11, %s9
  loop: start=0, step=1, limit=4
  $region2: #{conv_ffn.1} parent=0 // loop_pre_header
    _
  $region3: #{conv_ffn.1} parent=0 // loop_header
    %s14 = sphi 0, %s18
    %p15 = scmp.ge.s32.totalorder %s14, 4
    %s24 = sphi 0, %s26
    %s27 = sphi 0, %s24
    %s28 = sphi 0, %s27
    %s44 = sphi 0, %s28
    %s48 = sphi 0, %s48
    %s50 = sphi 0, %s48
    %s51 = sphi 0, %s50
    %s65 = sphi 0, %s51
    %s69 = sphi 0, %s69
    %s71 = sphi 0, %s69
    %s72 = sphi 0, %s71
    %s86 = sphi 0, %s72
    %s90 = sphi 0, %s90
    %s92 = sphi 0, %s90
    %s93 = sphi 0, %s92
    %s107 = sphi 0, %s93
    %s111 = sphi 0, %s111
    %s113 = sphi 0, %s111
    %s114 = sphi 0, %s113
    %s128 = sphi 0, %s114
    %s132 = sphi 0, %s132
    %s134 = sphi 0, %s132
    %s135 = sphi 0, %s134
    %s149 = sphi 0, %s135
    %s153 = sphi 0, %s153
    %s155 = sphi 0, %s153
    %s156 = sphi 0, %s155
    %s170 = sphi 0, %s156
    %s174 = sphi 0, %s174
    %s176 = sphi 0, %s174
    %s177 = sphi 0, %s176
    %s191 = sphi 0, %s177
    %s197 = sphi 0, %s199
    %s200 = sphi 0, %s197
    %s201 = sphi 0, %s200
    %s217 = sphi 0, %s201
  $region4: #{conv_ffn.1} parent=0 // loop_header_branch
    %17 = sbr.rel (%p15) target = $region8
  $region5: #{conv_ffn.1} parent=0 // loop_body
    %s19 = ssub.s32 %s14, 1
    %s20 = ssub.s32 %s14, 2
    %s21 = sadd.s32 %s14, 1
    %s22 = ssub.s32 %s14, %s21
    %p23 = scmp.eq.s32.totalorder %s22, 0
    %s25 = sadd.s32 %s24, 1
    %s26 = scalar_select %p23, %s24, %s25
    %p29 = pneg %p23
    %p30 = scmp.eq.s32.totalorder %s14, 1
    %p31 = por %p29, %p30
    %p32 = scmp.ne.s32.totalorder %s24, %s27
    %p33 = scmp.eq.s32.totalorder %s14, 0
    %p34 = por %p32, %p33
    %p35 = scmp.ne.s32.totalorder %s24, %s27
    %p36 = scmp.eq.s32.totalorder %s19, 1
    %p37 = por %p35, %p36
    %p38 = scmp.ne.s32.totalorder %s27, %s28
    %p39 = scmp.eq.s32.totalorder %s19, 0
    %p40 = por %p38, %p39
    %p41 = scmp.ne.s32.totalorder %s27, %s28
    %p42 = scmp.eq.s32.totalorder %s20, 1
    %p43 = por %p41, %p42
    %p45 = scmp.ne.s32.totalorder %s28, %s44
    %p46 = scmp.eq.s32.totalorder %s20, 0
    %p47 = por %p45, %p46
    %s49 = sadd.s32 %s48, 1
    %p52 = scmp.eq.s32.totalorder %s14, 1
    %p53 = scmp.ne.s32.totalorder %s48, %s50
    %p54 = scmp.eq.s32.totalorder %s14, 0
    %p55 = por %p53, %p54
    %p56 = scmp.ne.s32.totalorder %s48, %s50
    %p57 = scmp.eq.s32.totalorder %s19, 1
    %p58 = por %p56, %p57
    %p59 = scmp.ne.s32.totalorder %s50, %s51
    %p60 = scmp.eq.s32.totalorder %s19, 0
    %p61 = por %p59, %p60
    %p62 = scmp.ne.s32.totalorder %s50, %s51
    %p63 = scmp.eq.s32.totalorder %s20, 1
    %p64 = por %p62, %p63
    %p66 = scmp.ne.s32.totalorder %s51, %s65
    %p67 = scmp.eq.s32.totalorder %s20, 0
    %p68 = por %p66, %p67
    %s70 = sadd.s32 %s69, 1
    %p73 = scmp.eq.s32.totalorder %s14, 1
    %p74 = scmp.ne.s32.totalorder %s69, %s71
    %p75 = scmp.eq.s32.totalorder %s14, 0
    %p76 = por %p74, %p75
    %p77 = scmp.ne.s32.totalorder %s69, %s71
    %p78 = scmp.eq.s32.totalorder %s19, 1
    %p79 = por %p77, %p78
    %p80 = scmp.ne.s32.totalorder %s71, %s72
    %p81 = scmp.eq.s32.totalorder %s19, 0
    %p82 = por %p80, %p81
    %p83 = scmp.ne.s32.totalorder %s71, %s72
    %p84 = scmp.eq.s32.totalorder %s20, 1
    %p85 = por %p83, %p84
    %p87 = scmp.ne.s32.totalorder %s72, %s86
    %p88 = scmp.eq.s32.totalorder %s20, 0
    %p89 = por %p87, %p88
    %s91 = sadd.s32 %s90, 1
    %p94 = scmp.eq.s32.totalorder %s14, 1
    %p95 = scmp.ne.s32.totalorder %s90, %s92
    %p96 = scmp.eq.s32.totalorder %s14, 0
    %p97 = por %p95, %p96
    %p98 = scmp.ne.s32.totalorder %s90, %s92
    %p99 = scmp.eq.s32.totalorder %s19, 1
    %p100 = por %p98, %p99
    %p101 = scmp.ne.s32.totalorder %s92, %s93
    %p102 = scmp.eq.s32.totalorder %s19, 0
    %p103 = por %p101, %p102
    %p104 = scmp.ne.s32.totalorder %s92, %s93
    %p105 = scmp.eq.s32.totalorder %s20, 1
    %p106 = por %p104, %p105
    %p108 = scmp.ne.s32.totalorder %s93, %s107
    %p109 = scmp.eq.s32.totalorder %s20, 0
    %p110 = por %p108, %p109
    %s112 = sadd.s32 %s111, 1
    %p115 = scmp.eq.s32.totalorder %s14, 1
    %p116 = scmp.ne.s32.totalorder %s111, %s113
    %p117 = scmp.eq.s32.totalorder %s14, 0
    %p118 = por %p116, %p117
    %p119 = scmp.ne.s32.totalorder %s111, %s113
    %p120 = scmp.eq.s32.totalorder %s19, 1
    %p121 = por %p119, %p120
    %p122 = scmp.ne.s32.totalorder %s113, %s114
    %p123 = scmp.eq.s32.totalorder %s19, 0
    %p124 = por %p122, %p123
    %p125 = scmp.ne.s32.totalorder %s113, %s114
    %p126 = scmp.eq.s32.totalorder %s20, 1
    %p127 = por %p125, %p126
    %p129 = scmp.ne.s32.totalorder %s114, %s128
    %p130 = scmp.eq.s32.totalorder %s20, 0
    %p131 = por %p129, %p130
    %s133 = sadd.s32 %s132, 1
    %p136 = scmp.eq.s32.totalorder %s14, 1
    %p137 = scmp.ne.s32.totalorder %s132, %s134
    %p138 = scmp.eq.s32.totalorder %s14, 0
    %p139 = por %p137, %p138
    %p140 = scmp.ne.s32.totalorder %s132, %s134
    %p141 = scmp.eq.s32.totalorder %s19, 1
    %p142 = por %p140, %p141
    %p143 = scmp.ne.s32.totalorder %s134, %s135
    %p144 = scmp.eq.s32.totalorder %s19, 0
    %p145 = por %p143, %p144
    %p146 = scmp.ne.s32.totalorder %s134, %s135
    %p147 = scmp.eq.s32.totalorder %s20, 1
    %p148 = por %p146, %p147
    %p150 = scmp.ne.s32.totalorder %s135, %s149
    %p151 = scmp.eq.s32.totalorder %s20, 0
    %p152 = por %p150, %p151
    %s154 = sadd.s32 %s153, 1
    %p157 = scmp.eq.s32.totalorder %s14, 1
    %p158 = scmp.ne.s32.totalorder %s153, %s155
    %p159 = scmp.eq.s32.totalorder %s14, 0
    %p160 = por %p158, %p159
    %p161 = scmp.ne.s32.totalorder %s153, %s155
    %p162 = scmp.eq.s32.totalorder %s19, 1
    %p163 = por %p161, %p162
    %p164 = scmp.ne.s32.totalorder %s155, %s156
    %p165 = scmp.eq.s32.totalorder %s19, 0
    %p166 = por %p164, %p165
    %p167 = scmp.ne.s32.totalorder %s155, %s156
    %p168 = scmp.eq.s32.totalorder %s20, 1
    %p169 = por %p167, %p168
    %p171 = scmp.ne.s32.totalorder %s156, %s170
    %p172 = scmp.eq.s32.totalorder %s20, 0
    %p173 = por %p171, %p172
    %s175 = sadd.s32 %s174, 1
    %p178 = scmp.eq.s32.totalorder %s14, 1
    %p179 = scmp.ne.s32.totalorder %s174, %s176
    %p180 = scmp.eq.s32.totalorder %s14, 0
    %p181 = por %p179, %p180
    %p182 = scmp.ne.s32.totalorder %s174, %s176
    %p183 = scmp.eq.s32.totalorder %s19, 1
    %p184 = por %p182, %p183
    %p185 = scmp.ne.s32.totalorder %s176, %s177
    %p186 = scmp.eq.s32.totalorder %s19, 0
    %p187 = por %p185, %p186
    %p188 = scmp.ne.s32.totalorder %s176, %s177
    %p189 = scmp.eq.s32.totalorder %s20, 1
    %p190 = por %p188, %p189
    %p192 = scmp.ne.s32.totalorder %s177, %s191
    %p193 = scmp.eq.s32.totalorder %s20, 0
    %p194 = por %p192, %p193
    %s195 = ssub.s32 %s14, %s21
    %p196 = scmp.eq.s32.totalorder %s195, 0
    %s198 = sadd.s32 %s197, 1
    %s199 = scalar_select %p196, %s197, %s198
    %p202 = pneg %p196
    %p203 = scmp.eq.s32.totalorder %s14, 1
    %p204 = por %p202, %p203
    %p205 = scmp.ne.s32.totalorder %s197, %s200
    %p206 = scmp.eq.s32.totalorder %s14, 0
    %p207 = por %p205, %p206
    %p208 = scmp.ne.s32.totalorder %s197, %s200
    %p209 = scmp.eq.s32.totalorder %s19, 1
    %p210 = por %p208, %p209
    %p211 = scmp.ne.s32.totalorder %s200, %s201
    %p212 = scmp.eq.s32.totalorder %s19, 0
    %p213 = por %p211, %p212
    %p214 = scmp.ne.s32.totalorder %s200, %s201
    %p215 = scmp.eq.s32.totalorder %s20, 1
    %p216 = por %p214, %p215
    %p218 = scmp.ne.s32.totalorder %s201, %s217
    %p219 = scmp.eq.s32.totalorder %s20, 0
    %p220 = por %p218, %p219
    %p221 = scmp.le.s32.totalorder 1, %s14
    %p222 = scmp.lt.s32.totalorder %s14, 3
    %p223 = pnand %p221, %p222
    %p224 = pneg %p223
    // Predicated region
    $region9: #{conv_ffn.1} parent=5 // pred_check
      _
    $region10: #{conv_ffn.1} parent=5 // pred_check_branch
      %226 = sbr.rel (%p223) target = $region12
    $region11: #{conv_ffn.1} parent=5 // pred_region
      %s227 = ssub.s32 %s14, 1
      // Predicated region
      $region13: #{conv_ffn.1} parent=11 // pred_check
        %p228 = pneg %p61
      $region14: #{conv_ffn.1} parent=11 // pred_check_branch
        %230 = sbr.rel (%p228) target = $region16
      $region15: #{conv_ffn.1} parent=11 // pred_region
        _
      $region16: #{conv_ffn.1} parent=11 // pred_fallthru
        _
      // Predicated region
      $region17: #{conv_ffn.1} parent=11 // pred_check
        %p231 = pneg %p82
      $region18: #{conv_ffn.1} parent=11 // pred_check_branch
        %233 = sbr.rel (%p231) target = $region20
      $region19: #{conv_ffn.1} parent=11 // pred_region
        _
      $region20: #{conv_ffn.1} parent=11 // pred_fallthru
        _
      // Predicated region
      $region21: #{conv_ffn.1} parent=11 // pred_check
        %p234 = pneg %p103
      $region22: #{conv_ffn.1} parent=11 // pred_check_branch
        %236 = sbr.rel (%p234) target = $region24
      $region23: #{conv_ffn.1} parent=11 // pred_region
        _
      $region24: #{conv_ffn.1} parent=11 // pred_fallthru
        _
      // Predicated region
      $region25: #{conv_ffn.1} parent=11 // pred_check
        %p237 = pneg %p124
      $region26: #{conv_ffn.1} parent=11 // pred_check_branch
        %239 = sbr.rel (%p237) target = $region28
      $region27: #{conv_ffn.1} parent=11 // pred_region
        _
      $region28: #{conv_ffn.1} parent=11 // pred_fallthru
        _
      // Predicated region
      $region29: #{conv_ffn.1} parent=11 // pred_check
        %p240 = pneg %p145
      $region30: #{conv_ffn.1} parent=11 // pred_check_branch
        %242 = sbr.rel (%p240) target = $region32
      $region31: #{conv_ffn.1} parent=11 // pred_region
        _
      $region32: #{conv_ffn.1} parent=11 // pred_fallthru
        _
      // Predicated region
      $region33: #{conv_ffn.1} parent=11 // pred_check
        %p243 = pneg %p166
      $region34: #{conv_ffn.1} parent=11 // pred_check_branch
        %245 = sbr.rel (%p243) target = $region36
      $region35: #{conv_ffn.1} parent=11 // pred_region
        _
      $region36: #{conv_ffn.1} parent=11 // pred_fallthru
        _
      // Predicated region
      $region37: #{conv_ffn.1} parent=11 // pred_check
        %p246 = pneg %p187
      $region38: #{conv_ffn.1} parent=11 // pred_check_branch
        %248 = sbr.rel (%p246) target = $region40
      $region39: #{conv_ffn.1} parent=11 // pred_region
        _
      $region40: #{conv_ffn.1} parent=11 // pred_fallthru
        _
    $region12: #{conv_ffn.1} parent=5 // pred_fallthru
      _
    %p249 = scmp.lt.s32.totalorder %s14, 2
    // Predicated region
    $region41: #{conv_ffn.1} parent=5 // pred_check
      %p250 = pneg %p249
    $region42: #{conv_ffn.1} parent=5 // pred_check_branch
      %252 = sbr.rel (%p250) target = $region44
    $region43: #{conv_ffn.1} parent=5 // pred_region
      // Predicated region
      $region45: #{conv_ffn.1} parent=43 // pred_check
        %p253 = pneg %p34
      $region46: #{conv_ffn.1} parent=43 // pred_check_branch
        %255 = sbr.rel (%p253) target = $region48
      $region47: #{conv_ffn.1} parent=43 // pred_region
        %p256 = scmp.lt.s32.totalorder %s14, 1
        %s257 = scalar_select %p256, %s14, 1
        %s258 = smul.addr %s257, 4
        %s259 = smul.addr %s258, 8
        %s260 = scalar_lea.vmem %s0, %s259
      $region48: #{conv_ffn.1} parent=43 // pred_fallthru
        _
    $region44: #{conv_ffn.1} parent=5 // pred_fallthru
      _
    %p261 = scmp.le.s32.totalorder 1, %s14
    %p262 = scmp.lt.s32.totalorder %s14, 3
    %p263 = pnand %p261, %p262
    %p264 = pneg %p263
    // Predicated region
    $region49: #{conv_ffn.1} parent=5 // pred_check
      _
    $region50: #{conv_ffn.1} parent=5 // pred_check_branch
      %266 = sbr.rel (%p263) target = $region52
    $region51: #{conv_ffn.1} parent=5 // pred_region
      %s267 = ssub.s32 %s14, 1
      %p268 = scmp.lt.s32.totalorder %s19, 1
      %s269 = scalar_select %p268, %s19, 1
      %s270 = smul.addr %s269, 4
      %s271 = smul.addr %s270, 8
      %s272 = scalar_lea.vmem %s0, %s271
      %p273 = pneg %p40
      %p274 = pneg %p37
      %p275 = pneg %p61
      %p276 = pneg %p58
      %p277 = pneg %p82
      %p278 = pneg %p79
      %p279 = pneg %p103
      %p280 = pneg %p100
      %p281 = pneg %p124
      %p282 = pneg %p121
      %p283 = pneg %p145
      %p284 = pneg %p142
      %p285 = pneg %p166
      %p286 = pneg %p163
      %p287 = pneg %p187
      %p288 = pneg %p184
      %p289 = pneg %p213
      %p290 = pneg %p210
      %p291 = scmp.lt.s32.totalorder %s19, 1
      %s292 = scalar_select %p291, %s19, 1
      %s293 = smul.addr %s292, 4
      %s294 = smul.addr %s293, 8
      %s295 = scalar_lea.vmem %s8, %s294
      %p296 = scmp.lt.s32.totalorder %s19, 1
      %s297 = scalar_select %p296, %s19, 1
      %s298 = smul.addr %s297, 4
      %s299 = smul.addr %s298, 8
      %s300 = scalar_lea.vmem %s0, %s299
      %p301 = scmp.lt.s32.totalorder %s19, 1
      %s302 = scalar_select %p301, %s19, 1
      %s303 = smul.addr %s302, 4
      %s304 = smul.addr %s303, 8
      %s305 = scalar_lea.vmem %s8, %s304
      %v306 = vld [vmem:[%s1] sm:$0xff]
      %v307 = vld [vmem:[%s1 + $0x8] sm:$0xff]
      %v308 = vld [vmem:[%s1 + $0x10] sm:$0xff]
      %v309 = vld [vmem:[%s1 + $0x18] sm:$0xff]
      %v310 = vld [vmem:[%s300] sm:$0xff]
      %v311 = vld [vmem:[%s300 + $0x8] sm:$0xff]
      %v312 = vld [vmem:[%s300 + $0x10] sm:$0xff]
      %v313 = vld [vmem:[%s300 + $0x18] sm:$0xff]
      %v314 = vld [vmem:[%s2] sm:$0xff]
      %v315 = vld [vmem:[%s2 + $0x8] sm:$0xff]
      %v316 = vld [vmem:[%s2 + $0x10] sm:$0xff]
      %v317 = vld [vmem:[%s2 + $0x18] sm:$0xff]
      %319 = vset.pattern.permute.xlu0 0
      %320 = vperm.xlu0 %319, %v314
      %v321 = vpop.permute.xlu0 %320
      %324 = vset.pattern.permute.xlu0 0
      %325 = vperm.xlu0 %324, %v315
      %v326 = vpop.permute.xlu0 %325
      %329 = vset.pattern.permute.xlu0 0
      %330 = vperm.xlu0 %329, %v316
      %v331 = vpop.permute.xlu0 %330
      %334 = vset.pattern.permute.xlu0 0
      %335 = vperm.xlu0 %334, %v317
      %v336 = vpop.permute.xlu0 %335
      %vm338 = vcmask 130048
      %v340 = vsel %vm338, %v306, 0
      %v343 = vsel %vm338, %v307, 0
      %v346 = vsel %vm338, %v308, 0
      %v349 = vsel %vm338, %v309, 0
      %351 = vmatprep.subr.mxu0 0.0
      %352 = vmatpush1.msra.mxu0 0.0
      %353 = vmatprep.subr.mxu0 0.0
      %354 = vmatpush1.msra.mxu0 0.0
      %355 = vmatprep.subr.mxu0 0.0
      %356 = vmatpush1.msra.mxu0 0.0
      %357 = vmatprep.subr.mxu0 0.0
      %358 = vmatpush1.msra.mxu0 0.0
      %359 = vmatprep.subr.mxu0 0.0
      %360 = vmatpush1.msra.mxu0 0.0
      %361 = vmatprep.subr.mxu0 0.0
      %362 = vmatpush1.msra.mxu0 0.0
      %363 = vmatprep.subr.mxu0 0.0
      %364 = vmatpush1.msra.mxu0 0.0
      %365 = vmatprep.subr.mxu0 0.0
      %366 = vmatpush1.msra.mxu0 0.0
      %367 = vmatprep.subr.mxu0 0.0
      %368 = vmatpush1.msra.mxu0 0.0
      %369 = vmatprep.subr.mxu0 0.0
      %370 = vmatpush1.msra.mxu0 0.0
      %371 = vmatprep.subr.mxu0 0.0
      %372 = vmatpush1.msra.mxu0 0.0
      %373 = vmatprep.subr.mxu0 0.0
      %374 = vmatpush1.msra.mxu0 0.0
      %375 = vmatprep.subr.mxu0 0.0
      %376 = vmatpush1.msra.mxu0 0.0
      %377 = vmatprep.subr.mxu0 0.0
      %378 = vmatpush1.msra.mxu0 0.0
      %379 = vmatprep.subr.mxu0 %v313
      %380 = vmatpush1.msra.mxu0 %v312
      %381 = vmatprep.subr.mxu0 %v311
      %382 = vmatpush1.msra.mxu0 %v310
      %383 = vmatprep.subr.mxu0 0.0
      %384 = vmatpush2.msra.mxu0 0.0
      %385 = vmatprep.subr.mxu0 0.0
      %386 = vmatpush2.msra.mxu0 0.0
      %387 = vmatprep.subr.mxu0 0.0
      %388 = vmatpush2.msra.mxu0 0.0
      %389 = vmatprep.subr.mxu0 0.0
      %390 = vmatpush2.msra.mxu0 0.0
      %391 = vmatprep.subr.mxu0 0.0
      %392 = vmatpush2.msra.mxu0 0.0
      %393 = vmatprep.subr.mxu0 0.0
      %394 = vmatpush2.msra.mxu0 0.0
      %395 = vmatprep.subr.mxu0 0.0
      %396 = vmatpush2.msra.mxu0 0.0
      %397 = vmatprep.subr.mxu0 0.0
      %398 = vmatpush2.msra.mxu0 0.0
      %399 = vmatprep.subr.mxu0 0.0
      %400 = vmatpush2.msra.mxu0 0.0
      %401 = vmatprep.subr.mxu0 0.0
      %402 = vmatpush2.msra.mxu0 0.0
      %403 = vmatprep.subr.mxu0 0.0
      %404 = vmatpush2.msra.mxu0 0.0
      %405 = vmatprep.subr.mxu0 0.0
      %406 = vmatpush2.msra.mxu0 0.0
      %407 = vmatprep.subr.mxu0 0.0
      %408 = vmatpush2.msra.mxu0 0.0
      %409 = vmatprep.subr.mxu0 0.0
      %410 = vmatpush2.msra.mxu0 0.0
      %411 = vmatprep.subr.mxu0 0.0
      %412 = vmatpush2.msra.mxu0 0.0
      %413 = vmatprep.subr.mxu0 0.0
      %414 = vmatpush2.msra.mxu0 0.0
      %415 = vmatprep.mubr.f32.mxu0 0.0
      %416 = vmatmul.mubr.f32.gmra.mxu0 %v340
      %v417 = vpop.f32.mrf.mxu0
      %v418 = vadd.f32 %v321, %v417
      %v419 = vpop.f32.mrf.mxu0
      %v420 = vadd.f32 %v321, %v419
      %421 = vmatprep.mubr.f32.mxu0 0.0
      %422 = vmatmul.mubr.f32.gmra.mxu0 %v343
      %v423 = vpop.f32.mrf.mxu0
      %v424 = vadd.f32 %v326, %v423
      %v425 = vpop.f32.mrf.mxu0
      %v426 = vadd.f32 %v326, %v425
      %427 = vmatprep.mubr.f32.mxu0 0.0
      %428 = vmatmul.mubr.f32.gmra.mxu0 %v346
      %v429 = vpop.f32.mrf.mxu0
      %v430 = vadd.f32 %v331, %v429
      %v431 = vpop.f32.mrf.mxu0
      %v432 = vadd.f32 %v331, %v431
      %433 = vmatprep.mubr.f32.mxu0 0.0
      %434 = vmatmul.mubr.f32.gmra.mxu0 %v349
      %v435 = vpop.f32.mrf.mxu0
      %v436 = vadd.f32 %v336, %v435
      %v437 = vpop.f32.mrf.mxu0
      %v438 = vadd.f32 %v336, %v437
      %439 = vdwg.mxu0
      %v440 = vmul.f32 %v418, 0.5
      %v441 = vmul.f32 %v420, 0.5
      %v442 = vmul.f32 %v424, 0.5
      %v443 = vmul.f32 %v426, 0.5
      %v444 = vmul.f32 %v430, 0.5
      %v445 = vmul.f32 %v432, 0.5
      %v446 = vmul.f32 %v436, 0.5
      %v447 = vmul.f32 %v438, 0.5
      %v448 = vmul.f32 %v418, 0.70710677
      %v449 = vmul.f32 %v420, 0.70710677
      %v450 = vmul.f32 %v424, 0.70710677
      %v451 = vmul.f32 %v426, 0.70710677
      %v452 = vmul.f32 %v430, 0.70710677
      %v453 = vmul.f32 %v432, 0.70710677
      %v454 = vmul.f32 %v436, 0.70710677
      %v455 = vmul.f32 %v438, 0.70710677
      %v456 = vand.u32 2147483647, %v448
      %v457 = vand.u32 2147483647, %v449
      %v458 = vand.u32 2147483647, %v450
      %v459 = vand.u32 2147483647, %v451
      %v460 = vand.u32 2147483647, %v452
      %v461 = vand.u32 2147483647, %v453
      %v462 = vand.u32 2147483647, %v454
      %v463 = vand.u32 2147483647, %v455
      %v464 = vmul.f32 %v456, 0.3275911
      %v465 = vmul.f32 %v457, 0.3275911
      %v466 = vmul.f32 %v458, 0.3275911
      %v467 = vmul.f32 %v459, 0.3275911
      %v468 = vmul.f32 %v460, 0.3275911
      %v469 = vmul.f32 %v461, 0.3275911
      %v470 = vmul.f32 %v462, 0.3275911
      %v471 = vmul.f32 %v463, 0.3275911
      %v472 = vadd.f32 %v464, 1.0
      %v473 = vadd.f32 %v465, 1.0
      %v474 = vadd.f32 %v466, 1.0
      %v475 = vadd.f32 %v467, 1.0
      %v476 = vadd.f32 %v468, 1.0
      %v477 = vadd.f32 %v469, 1.0
      %v478 = vadd.f32 %v470, 1.0
      %v479 = vadd.f32 %v471, 1.0
      %v480 = vrcp.pop %v472
      %v481 = vmul.f32 1.0, %v480
      %v482 = vrcp.pop %v473
      %v483 = vmul.f32 1.0, %v482
      %v484 = vrcp.pop %v474
      %v485 = vmul.f32 1.0, %v484
      %v486 = vrcp.pop %v475
      %v487 = vmul.f32 1.0, %v486
      %v488 = vrcp.pop %v476
      %v489 = vmul.f32 1.0, %v488
      %v490 = vrcp.pop %v477
      %v491 = vmul.f32 1.0, %v490
      %v492 = vrcp.pop %v478
      %v493 = vmul.f32 1.0, %v492
      %v494 = vrcp.pop %v479
      %v495 = vmul.f32 1.0, %v494
      %v496 = vmul.f32 %v481, 1.0614054
      %v497 = vmul.f32 %v483, 1.0614054
      %v498 = vmul.f32 %v485, 1.0614054
      %v499 = vmul.f32 %v487, 1.0614054
      %v500 = vmul.f32 %v489, 1.0614054
      %v501 = vmul.f32 %v491, 1.0614054
      %v502 = vmul.f32 %v493, 1.0614054
      %v503 = vmul.f32 %v495, 1.0614054
      %v504 = vadd.f32 %v496, -1.4531521
      %v505 = vadd.f32 %v497, -1.4531521
      %v506 = vadd.f32 %v498, -1.4531521
      %v507 = vadd.f32 %v499, -1.4531521
      %v508 = vadd.f32 %v500, -1.4531521
      %v509 = vadd.f32 %v501, -1.4531521
      %v510 = vadd.f32 %v502, -1.4531521
      %v511 = vadd.f32 %v503, -1.4531521
      %v512 = vmul.f32 %v504, %v481
      %v513 = vmul.f32 %v505, %v483
      %v514 = vmul.f32 %v506, %v485
      %v515 = vmul.f32 %v507, %v487
      %v516 = vmul.f32 %v508, %v489
      %v517 = vmul.f32 %v509, %v491
      %v518 = vmul.f32 %v510, %v493
      %v519 = vmul.f32 %v511, %v495
      %v520 = vadd.f32 %v512, 1.4214138
      %v521 = vadd.f32 %v513, 1.4214138
      %v522 = vadd.f32 %v514, 1.4214138
      %v523 = vadd.f32 %v515, 1.4214138
      %v524 = vadd.f32 %v516, 1.4214138
      %v525 = vadd.f32 %v517, 1.4214138
      %v526 = vadd.f32 %v518, 1.4214138
      %v527 = vadd.f32 %v519, 1.4214138
      %v528 = vmul.f32 %v520, %v481
      %v529 = vmul.f32 %v521, %v483
      %v530 = vmul.f32 %v522, %v485
      %v531 = vmul.f32 %v523, %v487
      %v532 = vmul.f32 %v524, %v489
      %v533 = vmul.f32 %v525, %v491
      %v534 = vmul.f32 %v526, %v493
      %v535 = vmul.f32 %v527, %v495
      %v536 = vadd.f32 %v528, -0.28449672
      %v537 = vadd.f32 %v529, -0.28449672
      %v538 = vadd.f32 %v530, -0.28449672
      %v539 = vadd.f32 %v531, -0.28449672
      %v540 = vadd.f32 %v532, -0.28449672
      %v541 = vadd.f32 %v533, -0.28449672
      %v542 = vadd.f32 %v534, -0.28449672
      %v543 = vadd.f32 %v535, -0.28449672
      %v544 = vmul.f32 %v536, %v481
      %v545 = vmul.f32 %v537, %v483
      %v546 = vmul.f32 %v538, %v485
      %v547 = vmul.f32 %v539, %v487
      %v548 = vmul.f32 %v540, %v489
      %v549 = vmul.f32 %v541, %v491
      %v550 = vmul.f32 %v542, %v493
      %v551 = vmul.f32 %v543, %v495
      %v552 = vadd.f32 %v544, 0.2548296
      %v553 = vadd.f32 %v545, 0.2548296
      %v554 = vadd.f32 %v546, 0.2548296
      %v555 = vadd.f32 %v547, 0.2548296
      %v556 = vadd.f32 %v548, 0.2548296
      %v557 = vadd.f32 %v549, 0.2548296
      %v558 = vadd.f32 %v550, 0.2548296
      %v559 = vadd.f32 %v551, 0.2548296
      %v560 = vmul.f32 %v552, %v481
      %v561 = vmul.f32 %v553, %v483
      %v562 = vmul.f32 %v554, %v485
      %v563 = vmul.f32 %v555, %v487
      %v564 = vmul.f32 %v556, %v489
      %v565 = vmul.f32 %v557, %v491
      %v566 = vmul.f32 %v558, %v493
      %v567 = vmul.f32 %v559, %v495
      %v568 = vsub.f32 0.0, %v456
      %v569 = vsub.f32 0.0, %v457
      %v570 = vsub.f32 0.0, %v458
      %v571 = vsub.f32 0.0, %v459
      %v572 = vsub.f32 0.0, %v460
      %v573 = vsub.f32 0.0, %v461
      %v574 = vsub.f32 0.0, %v462
      %v575 = vsub.f32 0.0, %v463
      %v576 = vmul.f32 %v568, %v456
      %v577 = vmul.f32 %v569, %v457
      %v578 = vmul.f32 %v570, %v458
      %v579 = vmul.f32 %v571, %v459
      %v580 = vmul.f32 %v572, %v460
      %v581 = vmul.f32 %v573, %v461
      %v582 = vmul.f32 %v574, %v462
      %v583 = vmul.f32 %v575, %v463
      %v584 = vmul.f32 %v576, 1.442695
      %v585 = vpow.pop %v584
      %v586 = vmul.f32 %v577, 1.442695
      %v587 = vpow.pop %v586
      %v588 = vmul.f32 %v578, 1.442695
      %v589 = vpow.pop %v588
      %v590 = vmul.f32 %v579, 1.442695
      %v591 = vpow.pop %v590
      %v592 = vmul.f32 %v580, 1.442695
      %v593 = vpow.pop %v592
      %v594 = vmul.f32 %v581, 1.442695
      %v595 = vpow.pop %v594
      %v596 = vmul.f32 %v582, 1.442695
      %v597 = vpow.pop %v596
      %v598 = vmul.f32 %v583, 1.442695
      %v599 = vpow.pop %v598
      %v600 = vmul.f32 %v560, %v585
      %v601 = vmul.f32 %v561, %v587
      %v602 = vmul.f32 %v562, %v589
      %v603 = vmul.f32 %v563, %v591
      %v604 = vmul.f32 %v564, %v593
      %v605 = vmul.f32 %v565, %v595
      %v606 = vmul.f32 %v566, %v597
      %v607 = vmul.f32 %v567, %v599
      %v608 = vsub.f32 1.0, %v600
      %v609 = vsub.f32 1.0, %v601
      %v610 = vsub.f32 1.0, %v602
      %v611 = vsub.f32 1.0, %v603
      %v612 = vsub.f32 1.0, %v604
      %v613 = vsub.f32 1.0, %v605
      %v614 = vsub.f32 1.0, %v606
      %v615 = vsub.f32 1.0, %v607
      %vm616 = vcmp.ge.f32.partialorder %v448, 0.0
      %vm617 = vcmp.ge.f32.partialorder %v449, 0.0
      %vm618 = vcmp.ge.f32.partialorder %v450, 0.0
      %vm619 = vcmp.ge.f32.partialorder %v451, 0.0
      %vm620 = vcmp.ge.f32.partialorder %v452, 0.0
      %vm621 = vcmp.ge.f32.partialorder %v453, 0.0
      %vm622 = vcmp.ge.f32.partialorder %v454, 0.0
      %vm623 = vcmp.ge.f32.partialorder %v455, 0.0
      %v624 = vsub.f32 0.0, %v608
      %v625 = vsub.f32 0.0, %v609
      %v626 = vsub.f32 0.0, %v610
      %v627 = vsub.f32 0.0, %v611
      %v628 = vsub.f32 0.0, %v612
      %v629 = vsub.f32 0.0, %v613
      %v630 = vsub.f32 0.0, %v614
      %v631 = vsub.f32 0.0, %v615
      %v632 = vsel %vm616, %v608, %v624
      %v633 = vsel %vm617, %v609, %v625
      %v634 = vsel %vm618, %v610, %v626
      %v635 = vsel %vm619, %v611, %v627
      %v636 = vsel %vm620, %v612, %v628
      %v637 = vsel %vm621, %v613, %v629
      %v638 = vsel %vm622, %v614, %v630
      %v639 = vsel %vm623, %v615, %v631
      %v640 = vadd.f32 %v632, 1.0
      %v641 = vadd.f32 %v633, 1.0
      %v642 = vadd.f32 %v634, 1.0
      %v643 = vadd.f32 %v635, 1.0
      %v644 = vadd.f32 %v636, 1.0
      %v645 = vadd.f32 %v637, 1.0
      %v646 = vadd.f32 %v638, 1.0
      %v647 = vadd.f32 %v639, 1.0
      %v648 = vmul.f32 %v440, %v640
      %v649 = vmul.f32 %v441, %v641
      %v650 = vmul.f32 %v442, %v642
      %v651 = vmul.f32 %v443, %v643
      %v652 = vmul.f32 %v444, %v644
      %v653 = vmul.f32 %v445, %v645
      %v654 = vmul.f32 %v446, %v646
      %v655 = vmul.f32 %v447, %v647
      %656 = vrot.lane.b32.xlu0 %v648, 17
      %v657 = vpop.permute.xlu0 %656
      %658 = vrot.lane.b32.xlu0 %v650, 17
      %v659 = vpop.permute.xlu0 %658
      %660 = vrot.lane.b32.xlu0 %v652, 17
      %v661 = vpop.permute.xlu0 %660
      %662 = vrot.lane.b32.xlu0 %v654, 17
      %v663 = vpop.permute.xlu0 %662
      %664 = vrot.lane.b32.xlu0 %v649, 17
      %v665 = vpop.permute.xlu0 %664
      %666 = vrot.lane.b32.xlu0 %v651, 17
      %v667 = vpop.permute.xlu0 %666
      %668 = vrot.lane.b32.xlu0 %v653, 17
      %v669 = vpop.permute.xlu0 %668
      %670 = vrot.lane.b32.xlu0 %v655, 17
      %v671 = vpop.permute.xlu0 %670
      %v672 = vlaneseq
      %v673 = vand.u32 %v672, 127
      %vm674 = vcmp.lt.s32.totalorder %v673, 17
      %v675 = vsel %vm674, %v657, %v665
      %v676 = vsel %vm674, %v659, %v667
      %v677 = vsel %vm674, %v661, %v669
      %v678 = vsel %vm674, %v663, %v671
      %v679 = vsel %vm674, %v665, %v657
      %v680 = vsel %vm674, %v667, %v659
      %v681 = vsel %vm674, %v669, %v661
      %v682 = vsel %vm674, %v671, %v663
      %v683 = vld [vmem:[%s7] sm:$0x3]
      %v685 = vlaneseq
      %v686 = vshrl.u32 %v685, 7
      %v687 = vsub.s32 0, %v686
      %v688 = vrot.slane %v683, %v687
      %v689 = vlaneseq
      %v690 = vshrl.u32 %v689, 7
      %v691 = vsub.s32 1, %v690
      %v692 = vrot.slane %v683, %v691
      %v695 = vmul.f32 %v679, %v688
      %v696 = vmul.f32 %v675, %v692
      %v697 = vmul.f32 %v680, %v688
      %v698 = vmul.f32 %v676, %v692
      %v699 = vmul.f32 %v681, %v688
      %v700 = vmul.f32 %v677, %v692
      %v701 = vmul.f32 %v682, %v688
      %v702 = vmul.f32 %v678, %v692
      %v703 = vld [vmem:[%s3] sm:$0xff]
      %v704 = vld [vmem:[%s3 + $0x8] sm:$0xff]
      %v705 = vld [vmem:[%s3 + $0x10] sm:$0xff]
      %v706 = vld [vmem:[%s3 + $0x18] sm:$0xff]
      %708 = vset.pattern.permute.xlu0 0
      %709 = vperm.xlu0 %708, %v703
      %v710 = vpop.permute.xlu0 %709
      %713 = vset.pattern.permute.xlu0 0
      %714 = vperm.xlu0 %713, %v704
      %v715 = vpop.permute.xlu0 %714
      %718 = vset.pattern.permute.xlu0 0
      %719 = vperm.xlu0 %718, %v705
      %v720 = vpop.permute.xlu0 %719
      %723 = vset.pattern.permute.xlu0 0
      %724 = vperm.xlu0 %723, %v706
      %v725 = vpop.permute.xlu0 %724
      %v727 = vmul.f32 %v695, %v710
      %v728 = vmul.f32 %v696, %v710
      %v729 = vmul.f32 %v697, %v715
      %v730 = vmul.f32 %v698, %v715
      %v731 = vmul.f32 %v699, %v720
      %v732 = vmul.f32 %v700, %v720
      %v733 = vmul.f32 %v701, %v725
      %v734 = vmul.f32 %v702, %v725
      %735 = vrot.lane.b32.xlu0 %v648, 16
      %v736 = vpop.permute.xlu0 %735
      %737 = vrot.lane.b32.xlu0 %v650, 16
      %v738 = vpop.permute.xlu0 %737
      %739 = vrot.lane.b32.xlu0 %v652, 16
      %v740 = vpop.permute.xlu0 %739
      %741 = vrot.lane.b32.xlu0 %v654, 16
      %v742 = vpop.permute.xlu0 %741
      %743 = vrot.lane.b32.xlu0 %v649, 16
      %v744 = vpop.permute.xlu0 %743
      %745 = vrot.lane.b32.xlu0 %v651, 16
      %v746 = vpop.permute.xlu0 %745
      %747 = vrot.lane.b32.xlu0 %v653, 16
      %v748 = vpop.permute.xlu0 %747
      %749 = vrot.lane.b32.xlu0 %v655, 16
      %v750 = vpop.permute.xlu0 %749
      %vm751 = vcmp.lt.s32.totalorder %v673, 16
      %v752 = vsel %vm751, %v736, %v744
      %v753 = vsel %vm751, %v738, %v746
      %v754 = vsel %vm751, %v740, %v748
      %v755 = vsel %vm751, %v742, %v750
      %v756 = vsel %vm751, %v744, %v736
      %v757 = vsel %vm751, %v746, %v738
      %v758 = vsel %vm751, %v748, %v740
      %v759 = vsel %vm751, %v750, %v742
      %s760 = scalar_lea.vmem %s7, 2
      %v761 = vld [vmem:[%s760] sm:$0x3]
      %v763 = vlaneseq
      %v764 = vshrl.u32 %v763, 7
      %v765 = vsub.s32 0, %v764
      %v766 = vrot.slane %v761, %v765
      %v767 = vlaneseq
      %v768 = vshrl.u32 %v767, 7
      %v769 = vsub.s32 1, %v768
      %v770 = vrot.slane %v761, %v769
      %v773 = vmul.f32 %v756, %v766
      %v774 = vmul.f32 %v752, %v770
      %v775 = vmul.f32 %v757, %v766
      %v776 = vmul.f32 %v753, %v770
      %v777 = vmul.f32 %v758, %v766
      %v778 = vmul.f32 %v754, %v770
      %v779 = vmul.f32 %v759, %v766
      %v780 = vmul.f32 %v755, %v770
      %s781 = scalar_lea.vmem %s3, 32
      %v782 = vld [vmem:[%s781] sm:$0xff]
      %v783 = vld [vmem:[%s781 + $0x8] sm:$0xff]
      %v784 = vld [vmem:[%s781 + $0x10] sm:$0xff]
      %v785 = vld [vmem:[%s781 + $0x18] sm:$0xff]
      %787 = vset.pattern.permute.xlu0 0
      %788 = vperm.xlu0 %787, %v782
      %v789 = vpop.permute.xlu0 %788
      %792 = vset.pattern.permute.xlu0 0
      %793 = vperm.xlu0 %792, %v783
      %v794 = vpop.permute.xlu0 %793
      %797 = vset.pattern.permute.xlu0 0
      %798 = vperm.xlu0 %797, %v784
      %v799 = vpop.permute.xlu0 %798
      %802 = vset.pattern.permute.xlu0 0
      %803 = vperm.xlu0 %802, %v785
      %v804 = vpop.permute.xlu0 %803
      %v806 = vmul.f32 %v773, %v789
      %v807 = vmul.f32 %v774, %v789
      %v808 = vmul.f32 %v775, %v794
      %v809 = vmul.f32 %v776, %v794
      %v810 = vmul.f32 %v777, %v799
      %v811 = vmul.f32 %v778, %v799
      %v812 = vmul.f32 %v779, %v804
      %v813 = vmul.f32 %v780, %v804
      %v814 = vadd.f32 %v727, %v806
      %v815 = vadd.f32 %v728, %v807
      %v816 = vadd.f32 %v729, %v808
      %v817 = vadd.f32 %v730, %v809
      %v818 = vadd.f32 %v731, %v810
      %v819 = vadd.f32 %v732, %v811
      %v820 = vadd.f32 %v733, %v812
      %v821 = vadd.f32 %v734, %v813
      %822 = vrot.lane.b32.xlu0 %v648, 15
      %v823 = vpop.permute.xlu0 %822
      %824 = vrot.lane.b32.xlu0 %v650, 15
      %v825 = vpop.permute.xlu0 %824
      %826 = vrot.lane.b32.xlu0 %v652, 15
      %v827 = vpop.permute.xlu0 %826
      %828 = vrot.lane.b32.xlu0 %v654, 15
      %v829 = vpop.permute.xlu0 %828
      %830 = vrot.lane.b32.xlu0 %v649, 15
      %v831 = vpop.permute.xlu0 %830
      %832 = vrot.lane.b32.xlu0 %v651, 15
      %v833 = vpop.permute.xlu0 %832
      %834 = vrot.lane.b32.xlu0 %v653, 15
      %v835 = vpop.permute.xlu0 %834
      %836 = vrot.lane.b32.xlu0 %v655, 15
      %v837 = vpop.permute.xlu0 %836
      %vm838 = vcmp.lt.s32.totalorder %v673, 15
      %v839 = vsel %vm838, %v823, %v831
      %v840 = vsel %vm838, %v825, %v833
      %v841 = vsel %vm838, %v827, %v835
      %v842 = vsel %vm838, %v829, %v837
      %v843 = vsel %vm838, %v831, %v823
      %v844 = vsel %vm838, %v833, %v825
      %v845 = vsel %vm838, %v835, %v827
      %v846 = vsel %vm838, %v837, %v829
      %s847 = scalar_lea.vmem %s7, 4
      %v848 = vld [vmem:[%s847] sm:$0x3]
      %v850 = vlaneseq
      %v851 = vshrl.u32 %v850, 7
      %v852 = vsub.s32 0, %v851
      %v853 = vrot.slane %v848, %v852
      %v854 = vlaneseq
      %v855 = vshrl.u32 %v854, 7
      %v856 = vsub.s32 1, %v855
      %v857 = vrot.slane %v848, %v856
      %v860 = vmul.f32 %v843, %v853
      %v861 = vmul.f32 %v839, %v857
      %v862 = vmul.f32 %v844, %v853
      %v863 = vmul.f32 %v840, %v857
      %v864 = vmul.f32 %v845, %v853
      %v865 = vmul.f32 %v841, %v857
      %v866 = vmul.f32 %v846, %v853
      %v867 = vmul.f32 %v842, %v857
      %s868 = scalar_lea.vmem %s3, 64
      %v869 = vld [vmem:[%s868] sm:$0xff]
      %v870 = vld [vmem:[%s868 + $0x8] sm:$0xff]
      %v871 = vld [vmem:[%s868 + $0x10] sm:$0xff]
      %v872 = vld [vmem:[%s868 + $0x18] sm:$0xff]
      %874 = vset.pattern.permute.xlu0 0
      %875 = vperm.xlu0 %874, %v869
      %v876 = vpop.permute.xlu0 %875
      %879 = vset.pattern.permute.xlu0 0
      %880 = vperm.xlu0 %879, %v870
      %v881 = vpop.permute.xlu0 %880
      %884 = vset.pattern.permute.xlu0 0
      %885 = vperm.xlu0 %884, %v871
      %v886 = vpop.permute.xlu0 %885
      %889 = vset.pattern.permute.xlu0 0
      %890 = vperm.xlu0 %889, %v872
      %v891 = vpop.permute.xlu0 %890
      %v893 = vmul.f32 %v860, %v876
      %v894 = vmul.f32 %v861, %v876
      %v895 = vmul.f32 %v862, %v881
      %v896 = vmul.f32 %v863, %v881
      %v897 = vmul.f32 %v864, %v886
      %v898 = vmul.f32 %v865, %v886
      %v899 = vmul.f32 %v866, %v891
      %v900 = vmul.f32 %v867, %v891
      %v901 = vadd.f32 %v814, %v893
      %v902 = vadd.f32 %v815, %v894
      %v903 = vadd.f32 %v816, %v895
      %v904 = vadd.f32 %v817, %v896
      %v905 = vadd.f32 %v818, %v897
      %v906 = vadd.f32 %v819, %v898
      %v907 = vadd.f32 %v820, %v899
      %v908 = vadd.f32 %v821, %v900
      %909 = vrot.lane.b32.xlu0 %v648, 1
      %v910 = vpop.permute.xlu0 %909
      %911 = vrot.lane.b32.xlu0 %v650, 1
      %v912 = vpop.permute.xlu0 %911
      %913 = vrot.lane.b32.xlu0 %v652, 1
      %v914 = vpop.permute.xlu0 %913
      %915 = vrot.lane.b32.xlu0 %v654, 1
      %v916 = vpop.permute.xlu0 %915
      %917 = vrot.lane.b32.xlu0 %v649, 1
      %v918 = vpop.permute.xlu0 %917
      %919 = vrot.lane.b32.xlu0 %v651, 1
      %v920 = vpop.permute.xlu0 %919
      %921 = vrot.lane.b32.xlu0 %v653, 1
      %v922 = vpop.permute.xlu0 %921
      %923 = vrot.lane.b32.xlu0 %v655, 1
      %v924 = vpop.permute.xlu0 %923
      %vm925 = vcmp.lt.s32.totalorder %v673, 1
      %v926 = vsel %vm925, %v910, %v918
      %v927 = vsel %vm925, %v912, %v920
      %v928 = vsel %vm925, %v914, %v922
      %v929 = vsel %vm925, %v916, %v924
      %v930 = vsel %vm925, %v918, %v910
      %v931 = vsel %vm925, %v920, %v912
      %v932 = vsel %vm925, %v922, %v914
      %v933 = vsel %vm925, %v924, %v916
      %s934 = scalar_lea.vmem %s7, 6
      %v935 = vld [vmem:[%s934] sm:$0x3]
      %v937 = vlaneseq
      %v938 = vshrl.u32 %v937, 7
      %v939 = vsub.s32 0, %v938
      %v940 = vrot.slane %v935, %v939
      %v941 = vlaneseq
      %v942 = vshrl.u32 %v941, 7
      %v943 = vsub.s32 1, %v942
      %v944 = vrot.slane %v935, %v943
      %v947 = vmul.f32 %v930, %v940
      %v948 = vmul.f32 %v926, %v944
      %v949 = vmul.f32 %v931, %v940
      %v950 = vmul.f32 %v927, %v944
      %v951 = vmul.f32 %v932, %v940
      %v952 = vmul.f32 %v928, %v944
      %v953 = vmul.f32 %v933, %v940
      %v954 = vmul.f32 %v929, %v944
      %s955 = scalar_lea.vmem %s3, 96
      %v956 = vld [vmem:[%s955] sm:$0xff]
      %v957 = vld [vmem:[%s955 + $0x8] sm:$0xff]
      %v958 = vld [vmem:[%s955 + $0x10] sm:$0xff]
      %v959 = vld [vmem:[%s955 + $0x18] sm:$0xff]
      %961 = vset.pattern.permute.xlu0 0
      %962 = vperm.xlu0 %961, %v956
      %v963 = vpop.permute.xlu0 %962
      %966 = vset.pattern.permute.xlu0 0
      %967 = vperm.xlu0 %966, %v957
      %v968 = vpop.permute.xlu0 %967
      %971 = vset.pattern.permute.xlu0 0
      %972 = vperm.xlu0 %971, %v958
      %v973 = vpop.permute.xlu0 %972
      %976 = vset.pattern.permute.xlu0 0
      %977 = vperm.xlu0 %976, %v959
      %v978 = vpop.permute.xlu0 %977
      %v980 = vmul.f32 %v947, %v963
      %v981 = vmul.f32 %v948, %v963
      %v982 = vmul.f32 %v949, %v968
      %v983 = vmul.f32 %v950, %v968
      %v984 = vmul.f32 %v951, %v973
      %v985 = vmul.f32 %v952, %v973
      %v986 = vmul.f32 %v953, %v978
      %v987 = vmul.f32 %v954, %v978
      %v988 = vadd.f32 %v901, %v980
      %v989 = vadd.f32 %v902, %v981
      %v990 = vadd.f32 %v903, %v982
      %v991 = vadd.f32 %v904, %v983
      %v992 = vadd.f32 %v905, %v984
      %v993 = vadd.f32 %v906, %v985
      %v994 = vadd.f32 %v907, %v986
      %v995 = vadd.f32 %v908, %v987
      %s996 = scalar_lea.vmem %s3, 128
      %v997 = vld [vmem:[%s996] sm:$0xff]
      %v998 = vld [vmem:[%s996 + $0x8] sm:$0xff]
      %v999 = vld [vmem:[%s996 + $0x10] sm:$0xff]
      %v1000 = vld [vmem:[%s996 + $0x18] sm:$0xff]
      %1002 = vset.pattern.permute.xlu0 0
      %1003 = vperm.xlu0 %1002, %v997
      %v1004 = vpop.permute.xlu0 %1003
      %1007 = vset.pattern.permute.xlu0 0
      %1008 = vperm.xlu0 %1007, %v998
      %v1009 = vpop.permute.xlu0 %1008
      %1012 = vset.pattern.permute.xlu0 0
      %1013 = vperm.xlu0 %1012, %v999
      %v1014 = vpop.permute.xlu0 %1013
      %1017 = vset.pattern.permute.xlu0 0
      %1018 = vperm.xlu0 %1017, %v1000
      %v1019 = vpop.permute.xlu0 %1018
      %v1021 = vmul.f32 %v648, %v1004
      %v1022 = vmul.f32 %v649, %v1004
      %v1023 = vmul.f32 %v650, %v1009
      %v1024 = vmul.f32 %v651, %v1009
      %v1025 = vmul.f32 %v652, %v1014
      %v1026 = vmul.f32 %v653, %v1014
      %v1027 = vmul.f32 %v654, %v1019
      %v1028 = vmul.f32 %v655, %v1019
      %v1029 = vadd.f32 %v988, %v1021
      %v1030 = vadd.f32 %v989, %v1022
      %v1031 = vadd.f32 %v990, %v1023
      %v1032 = vadd.f32 %v991, %v1024
      %v1033 = vadd.f32 %v992, %v1025
      %v1034 = vadd.f32 %v993, %v1026
      %v1035 = vadd.f32 %v994, %v1027
      %v1036 = vadd.f32 %v995, %v1028
      %1037 = vrot.lane.b32.xlu0 %v648, 127
      %v1038 = vpop.permute.xlu0 %1037
      %1039 = vrot.lane.b32.xlu0 %v650, 127
      %v1040 = vpop.permute.xlu0 %1039
      %1041 = vrot.lane.b32.xlu0 %v652, 127
      %v1042 = vpop.permute.xlu0 %1041
      %1043 = vrot.lane.b32.xlu0 %v654, 127
      %v1044 = vpop.permute.xlu0 %1043
      %1045 = vrot.lane.b32.xlu0 %v649, 127
      %v1046 = vpop.permute.xlu0 %1045
      %1047 = vrot.lane.b32.xlu0 %v651, 127
      %v1048 = vpop.permute.xlu0 %1047
      %1049 = vrot.lane.b32.xlu0 %v653, 127
      %v1050 = vpop.permute.xlu0 %1049
      %1051 = vrot.lane.b32.xlu0 %v655, 127
      %v1052 = vpop.permute.xlu0 %1051
      %vm1053 = vcmp.lt.s32.totalorder %v673, 127
      %v1054 = vsel %vm1053, %v1038, %v1046
      %v1055 = vsel %vm1053, %v1040, %v1048
      %v1056 = vsel %vm1053, %v1042, %v1050
      %v1057 = vsel %vm1053, %v1044, %v1052
      %v1058 = vsel %vm1053, %v1046, %v1038
      %v1059 = vsel %vm1053, %v1048, %v1040
      %v1060 = vsel %vm1053, %v1050, %v1042
      %v1061 = vsel %vm1053, %v1052, %v1044
      %s1062 = scalar_lea.vmem %s7, 10
      %v1063 = vld [vmem:[%s1062] sm:$0x3]
      %v1065 = vlaneseq
      %v1066 = vshrl.u32 %v1065, 7
      %v1067 = vsub.s32 0, %v1066
      %v1068 = vrot.slane %v1063, %v1067
      %v1069 = vlaneseq
      %v1070 = vshrl.u32 %v1069, 7
      %v1071 = vsub.s32 1, %v1070
      %v1072 = vrot.slane %v1063, %v1071
      %v1075 = vmul.f32 %v1054, %v1068
      %v1076 = vmul.f32 %v1058, %v1072
      %v1077 = vmul.f32 %v1055, %v1068
      %v1078 = vmul.f32 %v1059, %v1072
      %v1079 = vmul.f32 %v1056, %v1068
      %v1080 = vmul.f32 %v1060, %v1072
      %v1081 = vmul.f32 %v1057, %v1068
      %v1082 = vmul.f32 %v1061, %v1072
      %s1083 = scalar_lea.vmem %s3, 160
      %v1084 = vld [vmem:[%s1083] sm:$0xff]
      %v1085 = vld [vmem:[%s1083 + $0x8] sm:$0xff]
      %v1086 = vld [vmem:[%s1083 + $0x10] sm:$0xff]
      %v1087 = vld [vmem:[%s1083 + $0x18] sm:$0xff]
      %1089 = vset.pattern.permute.xlu0 0
      %1090 = vperm.xlu0 %1089, %v1084
      %v1091 = vpop.permute.xlu0 %1090
      %1094 = vset.pattern.permute.xlu0 0
      %1095 = vperm.xlu0 %1094, %v1085
      %v1096 = vpop.permute.xlu0 %1095
      %1099 = vset.pattern.permute.xlu0 0
      %1100 = vperm.xlu0 %1099, %v1086
      %v1101 = vpop.permute.xlu0 %1100
      %1104 = vset.pattern.permute.xlu0 0
      %1105 = vperm.xlu0 %1104, %v1087
      %v1106 = vpop.permute.xlu0 %1105
      %v1108 = vmul.f32 %v1075, %v1091
      %v1109 = vmul.f32 %v1076, %v1091
      %v1110 = vmul.f32 %v1077, %v1096
      %v1111 = vmul.f32 %v1078, %v1096
      %v1112 = vmul.f32 %v1079, %v1101
      %v1113 = vmul.f32 %v1080, %v1101
      %v1114 = vmul.f32 %v1081, %v1106
      %v1115 = vmul.f32 %v1082, %v1106
      %v1116 = vadd.f32 %v1029, %v1108
      %v1117 = vadd.f32 %v1030, %v1109
      %v1118 = vadd.f32 %v1031, %v1110
      %v1119 = vadd.f32 %v1032, %v1111
      %v1120 = vadd.f32 %v1033, %v1112
      %v1121 = vadd.f32 %v1034, %v1113
      %v1122 = vadd.f32 %v1035, %v1114
      %v1123 = vadd.f32 %v1036, %v1115
      %1124 = vrot.lane.b32.xlu0 %v648, 113
      %v1125 = vpop.permute.xlu0 %1124
      %1126 = vrot.lane.b32.xlu0 %v650, 113
      %v1127 = vpop.permute.xlu0 %1126
      %1128 = vrot.lane.b32.xlu0 %v652, 113
      %v1129 = vpop.permute.xlu0 %1128
      %1130 = vrot.lane.b32.xlu0 %v654, 113
      %v1131 = vpop.permute.xlu0 %1130
      %1132 = vrot.lane.b32.xlu0 %v649, 113
      %v1133 = vpop.permute.xlu0 %1132
      %1134 = vrot.lane.b32.xlu0 %v651, 113
      %v1135 = vpop.permute.xlu0 %1134
      %1136 = vrot.lane.b32.xlu0 %v653, 113
      %v1137 = vpop.permute.xlu0 %1136
      %1138 = vrot.lane.b32.xlu0 %v655, 113
      %v1139 = vpop.permute.xlu0 %1138
      %vm1140 = vcmp.lt.s32.totalorder %v673, 113
      %v1141 = vsel %vm1140, %v1125, %v1133
      %v1142 = vsel %vm1140, %v1127, %v1135
      %v1143 = vsel %vm1140, %v1129, %v1137
      %v1144 = vsel %vm1140, %v1131, %v1139
      %v1145 = vsel %vm1140, %v1133, %v1125
      %v1146 = vsel %vm1140, %v1135, %v1127
      %v1147 = vsel %vm1140, %v1137, %v1129
      %v1148 = vsel %vm1140, %v1139, %v1131
      %s1149 = scalar_lea.vmem %s7, 12
      %v1150 = vld [vmem:[%s1149] sm:$0x3]
      %v1152 = vlaneseq
      %v1153 = vshrl.u32 %v1152, 7
      %v1154 = vsub.s32 0, %v1153
      %v1155 = vrot.slane %v1150, %v1154
      %v1156 = vlaneseq
      %v1157 = vshrl.u32 %v1156, 7
      %v1158 = vsub.s32 1, %v1157
      %v1159 = vrot.slane %v1150, %v1158
      %v1162 = vmul.f32 %v1141, %v1155
      %v1163 = vmul.f32 %v1145, %v1159
      %v1164 = vmul.f32 %v1142, %v1155
      %v1165 = vmul.f32 %v1146, %v1159
      %v1166 = vmul.f32 %v1143, %v1155
      %v1167 = vmul.f32 %v1147, %v1159
      %v1168 = vmul.f32 %v1144, %v1155
      %v1169 = vmul.f32 %v1148, %v1159
      %s1170 = scalar_lea.vmem %s3, 192
      %v1171 = vld [vmem:[%s1170] sm:$0xff]
      %v1172 = vld [vmem:[%s1170 + $0x8] sm:$0xff]
      %v1173 = vld [vmem:[%s1170 + $0x10] sm:$0xff]
      %v1174 = vld [vmem:[%s1170 + $0x18] sm:$0xff]
      %1176 = vset.pattern.permute.xlu0 0
      %1177 = vperm.xlu0 %1176, %v1171
      %v1178 = vpop.permute.xlu0 %1177
      %1181 = vset.pattern.permute.xlu0 0
      %1182 = vperm.xlu0 %1181, %v1172
      %v1183 = vpop.permute.xlu0 %1182
      %1186 = vset.pattern.permute.xlu0 0
      %1187 = vperm.xlu0 %1186, %v1173
      %v1188 = vpop.permute.xlu0 %1187
      %1191 = vset.pattern.permute.xlu0 0
      %1192 = vperm.xlu0 %1191, %v1174
      %v1193 = vpop.permute.xlu0 %1192
      %v1195 = vmul.f32 %v1162, %v1178
      %v1196 = vmul.f32 %v1163, %v1178
      %v1197 = vmul.f32 %v1164, %v1183
      %v1198 = vmul.f32 %v1165, %v1183
      %v1199 = vmul.f32 %v1166, %v1188
      %v1200 = vmul.f32 %v1167, %v1188
      %v1201 = vmul.f32 %v1168, %v1193
      %v1202 = vmul.f32 %v1169, %v1193
      %v1203 = vadd.f32 %v1116, %v1195
      %v1204 = vadd.f32 %v1117, %v1196
      %v1205 = vadd.f32 %v1118, %v1197
      %v1206 = vadd.f32 %v1119, %v1198
      %v1207 = vadd.f32 %v1120, %v1199
      %v1208 = vadd.f32 %v1121, %v1200
      %v1209 = vadd.f32 %v1122, %v1201
      %v1210 = vadd.f32 %v1123, %v1202
      %1211 = vrot.lane.b32.xlu0 %v648, 112
      %v1212 = vpop.permute.xlu0 %1211
      %1213 = vrot.lane.b32.xlu0 %v650, 112
      %v1214 = vpop.permute.xlu0 %1213
      %1215 = vrot.lane.b32.xlu0 %v652, 112
      %v1216 = vpop.permute.xlu0 %1215
      %1217 = vrot.lane.b32.xlu0 %v654, 112
      %v1218 = vpop.permute.xlu0 %1217
      %1219 = vrot.lane.b32.xlu0 %v649, 112
      %v1220 = vpop.permute.xlu0 %1219
      %1221 = vrot.lane.b32.xlu0 %v651, 112
      %v1222 = vpop.permute.xlu0 %1221
      %1223 = vrot.lane.b32.xlu0 %v653, 112
      %v1224 = vpop.permute.xlu0 %1223
      %1225 = vrot.lane.b32.xlu0 %v655, 112
      %v1226 = vpop.permute.xlu0 %1225
      %vm1227 = vcmp.lt.s32.totalorder %v673, 112
      %v1228 = vsel %vm1227, %v1212, %v1220
      %v1229 = vsel %vm1227, %v1214, %v1222
      %v1230 = vsel %vm1227, %v1216, %v1224
      %v1231 = vsel %vm1227, %v1218, %v1226
      %v1232 = vsel %vm1227, %v1220, %v1212
      %v1233 = vsel %vm1227, %v1222, %v1214
      %v1234 = vsel %vm1227, %v1224, %v1216
      %v1235 = vsel %vm1227, %v1226, %v1218
      %s1236 = scalar_lea.vmem %s7, 14
      %v1237 = vld [vmem:[%s1236] sm:$0x3]
      %v1239 = vlaneseq
      %v1240 = vshrl.u32 %v1239, 7
      %v1241 = vsub.s32 0, %v1240
      %v1242 = vrot.slane %v1237, %v1241
      %v1243 = vlaneseq
      %v1244 = vshrl.u32 %v1243, 7
      %v1245 = vsub.s32 1, %v1244
      %v1246 = vrot.slane %v1237, %v1245
      %v1249 = vmul.f32 %v1228, %v1242
      %v1250 = vmul.f32 %v1232, %v1246
      %v1251 = vmul.f32 %v1229, %v1242
      %v1252 = vmul.f32 %v1233, %v1246
      %v1253 = vmul.f32 %v1230, %v1242
      %v1254 = vmul.f32 %v1234, %v1246
      %v1255 = vmul.f32 %v1231, %v1242
      %v1256 = vmul.f32 %v1235, %v1246
      %s1257 = scalar_lea.vmem %s3, 224
      %v1258 = vld [vmem:[%s1257] sm:$0xff]
      %v1259 = vld [vmem:[%s1257 + $0x8] sm:$0xff]
      %v1260 = vld [vmem:[%s1257 + $0x10] sm:$0xff]
      %v1261 = vld [vmem:[%s1257 + $0x18] sm:$0xff]
      %1263 = vset.pattern.permute.xlu0 0
      %1264 = vperm.xlu0 %1263, %v1258
      %v1265 = vpop.permute.xlu0 %1264
      %1268 = vset.pattern.permute.xlu0 0
      %1269 = vperm.xlu0 %1268, %v1259
      %v1270 = vpop.permute.xlu0 %1269
      %1273 = vset.pattern.permute.xlu0 0
      %1274 = vperm.xlu0 %1273, %v1260
      %v1275 = vpop.permute.xlu0 %1274
      %1278 = vset.pattern.permute.xlu0 0
      %1279 = vperm.xlu0 %1278, %v1261
      %v1280 = vpop.permute.xlu0 %1279
      %v1282 = vmul.f32 %v1249, %v1265
      %v1283 = vmul.f32 %v1250, %v1265
      %v1284 = vmul.f32 %v1251, %v1270
      %v1285 = vmul.f32 %v1252, %v1270
      %v1286 = vmul.f32 %v1253, %v1275
      %v1287 = vmul.f32 %v1254, %v1275
      %v1288 = vmul.f32 %v1255, %v1280
      %v1289 = vmul.f32 %v1256, %v1280
      %v1290 = vadd.f32 %v1203, %v1282
      %v1291 = vadd.f32 %v1204, %v1283
      %v1292 = vadd.f32 %v1205, %v1284
      %v1293 = vadd.f32 %v1206, %v1285
      %v1294 = vadd.f32 %v1207, %v1286
      %v1295 = vadd.f32 %v1208, %v1287
      %v1296 = vadd.f32 %v1209, %v1288
      %v1297 = vadd.f32 %v1210, %v1289
      %1298 = vrot.lane.b32.xlu0 %v648, 111
      %v1299 = vpop.permute.xlu0 %1298
      %1300 = vrot.lane.b32.xlu0 %v650, 111
      %v1301 = vpop.permute.xlu0 %1300
      %1302 = vrot.lane.b32.xlu0 %v652, 111
      %v1303 = vpop.permute.xlu0 %1302
      %1304 = vrot.lane.b32.xlu0 %v654, 111
      %v1305 = vpop.permute.xlu0 %1304
      %1306 = vrot.lane.b32.xlu0 %v649, 111
      %v1307 = vpop.permute.xlu0 %1306
      %1308 = vrot.lane.b32.xlu0 %v651, 111
      %v1309 = vpop.permute.xlu0 %1308
      %1310 = vrot.lane.b32.xlu0 %v653, 111
      %v1311 = vpop.permute.xlu0 %1310
      %1312 = vrot.lane.b32.xlu0 %v655, 111
      %v1313 = vpop.permute.xlu0 %1312
      %vm1314 = vcmp.lt.s32.totalorder %v673, 111
      %v1315 = vsel %vm1314, %v1299, %v1307
      %v1316 = vsel %vm1314, %v1301, %v1309
      %v1317 = vsel %vm1314, %v1303, %v1311
      %v1318 = vsel %vm1314, %v1305, %v1313
      %v1319 = vsel %vm1314, %v1307, %v1299
      %v1320 = vsel %vm1314, %v1309, %v1301
      %v1321 = vsel %vm1314, %v1311, %v1303
      %v1322 = vsel %vm1314, %v1313, %v1305
      %s1323 = scalar_lea.vmem %s7, 16
      %v1324 = vld [vmem:[%s1323] sm:$0x3]
      %v1326 = vlaneseq
      %v1327 = vshrl.u32 %v1326, 7
      %v1328 = vsub.s32 0, %v1327
      %v1329 = vrot.slane %v1324, %v1328
      %v1330 = vlaneseq
      %v1331 = vshrl.u32 %v1330, 7
      %v1332 = vsub.s32 1, %v1331
      %v1333 = vrot.slane %v1324, %v1332
      %v1336 = vmul.f32 %v1315, %v1329
      %v1337 = vmul.f32 %v1319, %v1333
      %v1338 = vmul.f32 %v1316, %v1329
      %v1339 = vmul.f32 %v1320, %v1333
      %v1340 = vmul.f32 %v1317, %v1329
      %v1341 = vmul.f32 %v1321, %v1333
      %v1342 = vmul.f32 %v1318, %v1329
      %v1343 = vmul.f32 %v1322, %v1333
      %s1344 = scalar_lea.vmem %s3, 256
      %v1345 = vld [vmem:[%s1344] sm:$0xff]
      %v1346 = vld [vmem:[%s1344 + $0x8] sm:$0xff]
      %v1347 = vld [vmem:[%s1344 + $0x10] sm:$0xff]
      %v1348 = vld [vmem:[%s1344 + $0x18] sm:$0xff]
      %1350 = vset.pattern.permute.xlu0 0
      %1351 = vperm.xlu0 %1350, %v1345
      %v1352 = vpop.permute.xlu0 %1351
      %1355 = vset.pattern.permute.xlu0 0
      %1356 = vperm.xlu0 %1355, %v1346
      %v1357 = vpop.permute.xlu0 %1356
      %1360 = vset.pattern.permute.xlu0 0
      %1361 = vperm.xlu0 %1360, %v1347
      %v1362 = vpop.permute.xlu0 %1361
      %1365 = vset.pattern.permute.xlu0 0
      %1366 = vperm.xlu0 %1365, %v1348
      %v1367 = vpop.permute.xlu0 %1366
      %v1369 = vmul.f32 %v1336, %v1352
      %v1370 = vmul.f32 %v1337, %v1352
      %v1371 = vmul.f32 %v1338, %v1357
      %v1372 = vmul.f32 %v1339, %v1357
      %v1373 = vmul.f32 %v1340, %v1362
      %v1374 = vmul.f32 %v1341, %v1362
      %v1375 = vmul.f32 %v1342, %v1367
      %v1376 = vmul.f32 %v1343, %v1367
      %v1377 = vadd.f32 %v1290, %v1369
      %v1378 = vadd.f32 %v1291, %v1370
      %v1379 = vadd.f32 %v1292, %v1371
      %v1380 = vadd.f32 %v1293, %v1372
      %v1381 = vadd.f32 %v1294, %v1373
      %v1382 = vadd.f32 %v1295, %v1374
      %v1383 = vadd.f32 %v1296, %v1375
      %v1384 = vadd.f32 %v1297, %v1376
      %v1385 = vld [vmem:[%s4] sm:$0xff]
      %v1386 = vld [vmem:[%s4 + $0x8] sm:$0xff]
      %v1387 = vld [vmem:[%s4 + $0x10] sm:$0xff]
      %v1388 = vld [vmem:[%s4 + $0x18] sm:$0xff]
      %1390 = vset.pattern.permute.xlu0 0
      %1391 = vperm.xlu0 %1390, %v1385
      %v1392 = vpop.permute.xlu0 %1391
      %1395 = vset.pattern.permute.xlu0 0
      %1396 = vperm.xlu0 %1395, %v1386
      %v1397 = vpop.permute.xlu0 %1396
      %1400 = vset.pattern.permute.xlu0 0
      %1401 = vperm.xlu0 %1400, %v1387
      %v1402 = vpop.permute.xlu0 %1401
      %1405 = vset.pattern.permute.xlu0 0
      %1406 = vperm.xlu0 %1405, %v1388
      %v1407 = vpop.permute.xlu0 %1406
      %v1409 = vadd.f32 %v1377, %v1392
      %v1410 = vadd.f32 %v1378, %v1392
      %v1411 = vadd.f32 %v1379, %v1397
      %v1412 = vadd.f32 %v1380, %v1397
      %v1413 = vadd.f32 %v1381, %v1402
      %v1414 = vadd.f32 %v1382, %v1402
      %v1415 = vadd.f32 %v1383, %v1407
      %v1416 = vadd.f32 %v1384, %v1407
      %v1417 = vmul.f32 %v1409, 0.5
      %v1418 = vmul.f32 %v1410, 0.5
      %v1419 = vmul.f32 %v1411, 0.5
      %v1420 = vmul.f32 %v1412, 0.5
      %v1421 = vmul.f32 %v1413, 0.5
      %v1422 = vmul.f32 %v1414, 0.5
      %v1423 = vmul.f32 %v1415, 0.5
      %v1424 = vmul.f32 %v1416, 0.5
      %v1425 = vmul.f32 %v1409, 0.70710677
      %v1426 = vmul.f32 %v1410, 0.70710677
      %v1427 = vmul.f32 %v1411, 0.70710677
      %v1428 = vmul.f32 %v1412, 0.70710677
      %v1429 = vmul.f32 %v1413, 0.70710677
      %v1430 = vmul.f32 %v1414, 0.70710677
      %v1431 = vmul.f32 %v1415, 0.70710677
      %v1432 = vmul.f32 %v1416, 0.70710677
      %v1433 = vand.u32 2147483647, %v1425
      %v1434 = vand.u32 2147483647, %v1426
      %v1435 = vand.u32 2147483647, %v1427
      %v1436 = vand.u32 2147483647, %v1428
      %v1437 = vand.u32 2147483647, %v1429
      %v1438 = vand.u32 2147483647, %v1430
      %v1439 = vand.u32 2147483647, %v1431
      %v1440 = vand.u32 2147483647, %v1432
      %v1441 = vmul.f32 %v1433, 0.3275911
      %v1442 = vmul.f32 %v1434, 0.3275911
      %v1443 = vmul.f32 %v1435, 0.3275911
      %v1444 = vmul.f32 %v1436, 0.3275911
      %v1445 = vmul.f32 %v1437, 0.3275911
      %v1446 = vmul.f32 %v1438, 0.3275911
      %v1447 = vmul.f32 %v1439, 0.3275911
      %v1448 = vmul.f32 %v1440, 0.3275911
      %v1449 = vadd.f32 %v1441, 1.0
      %v1450 = vadd.f32 %v1442, 1.0
      %v1451 = vadd.f32 %v1443, 1.0
      %v1452 = vadd.f32 %v1444, 1.0
      %v1453 = vadd.f32 %v1445, 1.0
      %v1454 = vadd.f32 %v1446, 1.0
      %v1455 = vadd.f32 %v1447, 1.0
      %v1456 = vadd.f32 %v1448, 1.0
      %v1457 = vrcp.pop %v1449
      %v1458 = vmul.f32 1.0, %v1457
      %v1459 = vrcp.pop %v1450
      %v1460 = vmul.f32 1.0, %v1459
      %v1461 = vrcp.pop %v1451
      %v1462 = vmul.f32 1.0, %v1461
      %v1463 = vrcp.pop %v1452
      %v1464 = vmul.f32 1.0, %v1463
      %v1465 = vrcp.pop %v1453
      %v1466 = vmul.f32 1.0, %v1465
      %v1467 = vrcp.pop %v1454
      %v1468 = vmul.f32 1.0, %v1467
      %v1469 = vrcp.pop %v1455
      %v1470 = vmul.f32 1.0, %v1469
      %v1471 = vrcp.pop %v1456
      %v1472 = vmul.f32 1.0, %v1471
      %v1473 = vmul.f32 %v1458, 1.0614054
      %v1474 = vmul.f32 %v1460, 1.0614054
      %v1475 = vmul.f32 %v1462, 1.0614054
      %v1476 = vmul.f32 %v1464, 1.0614054
      %v1477 = vmul.f32 %v1466, 1.0614054
      %v1478 = vmul.f32 %v1468, 1.0614054
      %v1479 = vmul.f32 %v1470, 1.0614054
      %v1480 = vmul.f32 %v1472, 1.0614054
      %v1481 = vadd.f32 %v1473, -1.4531521
      %v1482 = vadd.f32 %v1474, -1.4531521
      %v1483 = vadd.f32 %v1475, -1.4531521
      %v1484 = vadd.f32 %v1476, -1.4531521
      %v1485 = vadd.f32 %v1477, -1.4531521
      %v1486 = vadd.f32 %v1478, -1.4531521
      %v1487 = vadd.f32 %v1479, -1.4531521
      %v1488 = vadd.f32 %v1480, -1.4531521
      %v1489 = vmul.f32 %v1481, %v1458
      %v1490 = vmul.f32 %v1482, %v1460
      %v1491 = vmul.f32 %v1483, %v1462
      %v1492 = vmul.f32 %v1484, %v1464
      %v1493 = vmul.f32 %v1485, %v1466
      %v1494 = vmul.f32 %v1486, %v1468
      %v1495 = vmul.f32 %v1487, %v1470
      %v1496 = vmul.f32 %v1488, %v1472
      %v1497 = vadd.f32 %v1489, 1.4214138
      %v1498 = vadd.f32 %v1490, 1.4214138
      %v1499 = vadd.f32 %v1491, 1.4214138
      %v1500 = vadd.f32 %v1492, 1.4214138
      %v1501 = vadd.f32 %v1493, 1.4214138
      %v1502 = vadd.f32 %v1494, 1.4214138
      %v1503 = vadd.f32 %v1495, 1.4214138
      %v1504 = vadd.f32 %v1496, 1.4214138
      %v1505 = vmul.f32 %v1497, %v1458
      %v1506 = vmul.f32 %v1498, %v1460
      %v1507 = vmul.f32 %v1499, %v1462
      %v1508 = vmul.f32 %v1500, %v1464
      %v1509 = vmul.f32 %v1501, %v1466
      %v1510 = vmul.f32 %v1502, %v1468
      %v1511 = vmul.f32 %v1503, %v1470
      %v1512 = vmul.f32 %v1504, %v1472
      %v1513 = vadd.f32 %v1505, -0.28449672
      %v1514 = vadd.f32 %v1506, -0.28449672
      %v1515 = vadd.f32 %v1507, -0.28449672
      %v1516 = vadd.f32 %v1508, -0.28449672
      %v1517 = vadd.f32 %v1509, -0.28449672
      %v1518 = vadd.f32 %v1510, -0.28449672
      %v1519 = vadd.f32 %v1511, -0.28449672
      %v1520 = vadd.f32 %v1512, -0.28449672
      %v1521 = vmul.f32 %v1513, %v1458
      %v1522 = vmul.f32 %v1514, %v1460
      %v1523 = vmul.f32 %v1515, %v1462
      %v1524 = vmul.f32 %v1516, %v1464
      %v1525 = vmul.f32 %v1517, %v1466
      %v1526 = vmul.f32 %v1518, %v1468
      %v1527 = vmul.f32 %v1519, %v1470
      %v1528 = vmul.f32 %v1520, %v1472
      %v1529 = vadd.f32 %v1521, 0.2548296
      %v1530 = vadd.f32 %v1522, 0.2548296
      %v1531 = vadd.f32 %v1523, 0.2548296
      %v1532 = vadd.f32 %v1524, 0.2548296
      %v1533 = vadd.f32 %v1525, 0.2548296
      %v1534 = vadd.f32 %v1526, 0.2548296
      %v1535 = vadd.f32 %v1527, 0.2548296
      %v1536 = vadd.f32 %v1528, 0.2548296
      %v1537 = vmul.f32 %v1529, %v1458
      %v1538 = vmul.f32 %v1530, %v1460
      %v1539 = vmul.f32 %v1531, %v1462
      %v1540 = vmul.f32 %v1532, %v1464
      %v1541 = vmul.f32 %v1533, %v1466
      %v1542 = vmul.f32 %v1534, %v1468
      %v1543 = vmul.f32 %v1535, %v1470
      %v1544 = vmul.f32 %v1536, %v1472
      %v1545 = vsub.f32 0.0, %v1433
      %v1546 = vsub.f32 0.0, %v1434
      %v1547 = vsub.f32 0.0, %v1435
      %v1548 = vsub.f32 0.0, %v1436
      %v1549 = vsub.f32 0.0, %v1437
      %v1550 = vsub.f32 0.0, %v1438
      %v1551 = vsub.f32 0.0, %v1439
      %v1552 = vsub.f32 0.0, %v1440
      %v1553 = vmul.f32 %v1545, %v1433
      %v1554 = vmul.f32 %v1546, %v1434
      %v1555 = vmul.f32 %v1547, %v1435
      %v1556 = vmul.f32 %v1548, %v1436
      %v1557 = vmul.f32 %v1549, %v1437
      %v1558 = vmul.f32 %v1550, %v1438
      %v1559 = vmul.f32 %v1551, %v1439
      %v1560 = vmul.f32 %v1552, %v1440
      %v1561 = vmul.f32 %v1553, 1.442695
      %v1562 = vpow.pop %v1561
      %v1563 = vmul.f32 %v1554, 1.442695
      %v1564 = vpow.pop %v1563
      %v1565 = vmul.f32 %v1555, 1.442695
      %v1566 = vpow.pop %v1565
      %v1567 = vmul.f32 %v1556, 1.442695
      %v1568 = vpow.pop %v1567
      %v1569 = vmul.f32 %v1557, 1.442695
      %v1570 = vpow.pop %v1569
      %v1571 = vmul.f32 %v1558, 1.442695
      %v1572 = vpow.pop %v1571
      %v1573 = vmul.f32 %v1559, 1.442695
      %v1574 = vpow.pop %v1573
      %v1575 = vmul.f32 %v1560, 1.442695
      %v1576 = vpow.pop %v1575
      %v1577 = vmul.f32 %v1537, %v1562
      %v1578 = vmul.f32 %v1538, %v1564
      %v1579 = vmul.f32 %v1539, %v1566
      %v1580 = vmul.f32 %v1540, %v1568
      %v1581 = vmul.f32 %v1541, %v1570
      %v1582 = vmul.f32 %v1542, %v1572
      %v1583 = vmul.f32 %v1543, %v1574
      %v1584 = vmul.f32 %v1544, %v1576
      %v1585 = vsub.f32 1.0, %v1577
      %v1586 = vsub.f32 1.0, %v1578
      %v1587 = vsub.f32 1.0, %v1579
      %v1588 = vsub.f32 1.0, %v1580
      %v1589 = vsub.f32 1.0, %v1581
      %v1590 = vsub.f32 1.0, %v1582
      %v1591 = vsub.f32 1.0, %v1583
      %v1592 = vsub.f32 1.0, %v1584
      %vm1593 = vcmp.ge.f32.partialorder %v1425, 0.0
      %vm1594 = vcmp.ge.f32.partialorder %v1426, 0.0
      %vm1595 = vcmp.ge.f32.partialorder %v1427, 0.0
      %vm1596 = vcmp.ge.f32.partialorder %v1428, 0.0
      %vm1597 = vcmp.ge.f32.partialorder %v1429, 0.0
      %vm1598 = vcmp.ge.f32.partialorder %v1430, 0.0
      %vm1599 = vcmp.ge.f32.partialorder %v1431, 0.0
      %vm1600 = vcmp.ge.f32.partialorder %v1432, 0.0
      %v1601 = vsub.f32 0.0, %v1585
      %v1602 = vsub.f32 0.0, %v1586
      %v1603 = vsub.f32 0.0, %v1587
      %v1604 = vsub.f32 0.0, %v1588
      %v1605 = vsub.f32 0.0, %v1589
      %v1606 = vsub.f32 0.0, %v1590
      %v1607 = vsub.f32 0.0, %v1591
      %v1608 = vsub.f32 0.0, %v1592
      %v1609 = vsel %vm1593, %v1585, %v1601
      %v1610 = vsel %vm1594, %v1586, %v1602
      %v1611 = vsel %vm1595, %v1587, %v1603
      %v1612 = vsel %vm1596, %v1588, %v1604
      %v1613 = vsel %vm1597, %v1589, %v1605
      %v1614 = vsel %vm1598, %v1590, %v1606
      %v1615 = vsel %vm1599, %v1591, %v1607
      %v1616 = vsel %vm1600, %v1592, %v1608
      %v1617 = vadd.f32 %v1609, 1.0
      %v1618 = vadd.f32 %v1610, 1.0
      %v1619 = vadd.f32 %v1611, 1.0
      %v1620 = vadd.f32 %v1612, 1.0
      %v1621 = vadd.f32 %v1613, 1.0
      %v1622 = vadd.f32 %v1614, 1.0
      %v1623 = vadd.f32 %v1615, 1.0
      %v1624 = vadd.f32 %v1616, 1.0
      %v1625 = vmul.f32 %v1417, %v1617
      %v1626 = vmul.f32 %v1418, %v1618
      %v1627 = vmul.f32 %v1419, %v1619
      %v1628 = vmul.f32 %v1420, %v1620
      %v1629 = vmul.f32 %v1421, %v1621
      %v1630 = vmul.f32 %v1422, %v1622
      %v1631 = vmul.f32 %v1423, %v1623
      %v1632 = vmul.f32 %v1424, %v1624
      %v1633 = vadd.f32 %v1625, %v648
      %v1634 = vadd.f32 %v1626, %v649
      %v1635 = vadd.f32 %v1627, %v650
      %v1636 = vadd.f32 %v1628, %v651
      %v1637 = vadd.f32 %v1629, %v652
      %v1638 = vadd.f32 %v1630, %v653
      %v1639 = vadd.f32 %v1631, %v654
      %v1640 = vadd.f32 %v1632, %v655
      %v1641 = vld [vmem:[%s5] sm:$0xff]
      %v1642 = vld [vmem:[%s5 + $0x8] sm:$0xff]
      %v1643 = vld [vmem:[%s6] sm:$0xff]
      %v1644 = vld [vmem:[%s6 + $0x8] sm:$0xff]
      %1646 = vset.pattern.permute.xlu0 0
      %1647 = vperm.xlu0 %1646, %v1643
      %v1648 = vpop.permute.xlu0 %1647
      %1651 = vset.pattern.permute.xlu0 0
      %1652 = vperm.xlu0 %1651, %v1644
      %v1653 = vpop.permute.xlu0 %1652
      %vm1655 = vcmask 261120
      %v1657 = vsel %vm1655, %v1641, 0
      %v1660 = vsel %vm1655, %v1642, 0
      %1662 = vmatprep.subr.mxu0 0.0
      %1663 = vmatpush1.msra.mxu0 0.0
      %1664 = vmatprep.subr.mxu0 0.0
      %1665 = vmatpush1.msra.mxu0 0.0
      %1666 = vmatprep.subr.mxu0 0.0
      %1667 = vmatpush1.msra.mxu0 0.0
      %1668 = vmatprep.subr.mxu0 0.0
      %1669 = vmatpush1.msra.mxu0 0.0
      %1670 = vmatprep.subr.mxu0 0.0
      %1671 = vmatpush1.msra.mxu0 0.0
      %1672 = vmatprep.subr.mxu0 0.0
      %1673 = vmatpush1.msra.mxu0 0.0
      %1674 = vmatprep.subr.mxu0 0.0
      %1675 = vmatpush1.msra.mxu0 0.0
      %1676 = vmatprep.subr.mxu0 0.0
      %1677 = vmatpush1.msra.mxu0 0.0
      %1678 = vmatprep.subr.mxu0 0.0
      %1679 = vmatpush1.msra.mxu0 0.0
      %1680 = vmatprep.subr.mxu0 0.0
      %1681 = vmatpush1.msra.mxu0 0.0
      %1682 = vmatprep.subr.mxu0 0.0
      %1683 = vmatpush1.msra.mxu0 0.0
      %1684 = vmatprep.subr.mxu0 0.0
      %1685 = vmatpush1.msra.mxu0 0.0
      %1686 = vmatprep.subr.mxu0 %v1640
      %1687 = vmatpush1.msra.mxu0 %v1639
      %1688 = vmatprep.subr.mxu0 %v1638
      %1689 = vmatpush1.msra.mxu0 %v1637
      %1690 = vmatprep.subr.mxu0 %v1636
      %1691 = vmatpush1.msra.mxu0 %v1635
      %1692 = vmatprep.subr.mxu0 %v1634
      %1693 = vmatpush1.msra.mxu0 %v1633
      %1694 = vmatprep.subr.mxu0 0.0
      %1695 = vmatpush2.msra.mxu0 0.0
      %1696 = vmatprep.subr.mxu0 0.0
      %1697 = vmatpush2.msra.mxu0 0.0
      %1698 = vmatprep.subr.mxu0 0.0
      %1699 = vmatpush2.msra.mxu0 0.0
      %1700 = vmatprep.subr.mxu0 0.0
      %1701 = vmatpush2.msra.mxu0 0.0
      %1702 = vmatprep.subr.mxu0 0.0
      %1703 = vmatpush2.msra.mxu0 0.0
      %1704 = vmatprep.subr.mxu0 0.0
      %1705 = vmatpush2.msra.mxu0 0.0
      %1706 = vmatprep.subr.mxu0 0.0
      %1707 = vmatpush2.msra.mxu0 0.0
      %1708 = vmatprep.subr.mxu0 0.0
      %1709 = vmatpush2.msra.mxu0 0.0
      %1710 = vmatprep.subr.mxu0 0.0
      %1711 = vmatpush2.msra.mxu0 0.0
      %1712 = vmatprep.subr.mxu0 0.0
      %1713 = vmatpush2.msra.mxu0 0.0
      %1714 = vmatprep.subr.mxu0 0.0
      %1715 = vmatpush2.msra.mxu0 0.0
      %1716 = vmatprep.subr.mxu0 0.0
      %1717 = vmatpush2.msra.mxu0 0.0
      %1718 = vmatprep.subr.mxu0 0.0
      %1719 = vmatpush2.msra.mxu0 0.0
      %1720 = vmatprep.subr.mxu0 0.0
      %1721 = vmatpush2.msra.mxu0 0.0
      %1722 = vmatprep.subr.mxu0 0.0
      %1723 = vmatpush2.msra.mxu0 0.0
      %1724 = vmatprep.subr.mxu0 0.0
      %1725 = vmatpush2.msra.mxu0 0.0
      %1726 = vmatprep.mubr.f32.mxu0 0.0
      %1727 = vmatmul.mubr.f32.gmra.mxu0 %v1657
      %v1728 = vpop.f32.mrf.mxu0
      %v1729 = vadd.f32 %v1648, %v1728
      %v1730 = vpop.f32.mrf.mxu0
      %v1731 = vadd.f32 %v1648, %v1730
      %1732 = vmatprep.mubr.f32.mxu0 0.0
      %1733 = vmatmul.mubr.f32.gmra.mxu0 %v1660
      %v1734 = vpop.f32.mrf.mxu0
      %v1735 = vadd.f32 %v1653, %v1734
      %v1736 = vpop.f32.mrf.mxu0
      %v1737 = vadd.f32 %v1653, %v1736
      %1738 = vdwg.mxu0
      %1739 = vst [vmem:[%s305] sm:$0xff] %v1729
      %1740 = vst [vmem:[%s305 + $0x8] sm:$0xff] %v1731
      %1741 = vst [vmem:[%s305 + $0x10] sm:$0xff] %v1735
      %1742 = vst [vmem:[%s305 + $0x18] sm:$0xff] %v1737
      %p1743 = scmp.lt.s32.totalorder %s19, 1
      %s1744 = scalar_select %p1743, %s19, 1
      %s1745 = smul.addr %s1744, 4
      %s1746 = smul.addr %s1745, 8
      %s1747 = scalar_lea.vmem %s8, %s1746
      // Predicated region
      $region53: #{conv_ffn.1} parent=51 // pred_check
        %p1748 = pneg %p210
      $region54: #{conv_ffn.1} parent=51 // pred_check_branch
        %1750 = sbr.rel (%p1748) target = $region56
      $region55: #{conv_ffn.1} parent=51 // pred_region
        _
      $region56: #{conv_ffn.1} parent=51 // pred_fallthru
        _
    $region52: #{conv_ffn.1} parent=5 // pred_fallthru
      _
    %p1751 = scmp.le.s32.totalorder 2, %s14
    // Predicated region
    $region57: #{conv_ffn.1} parent=5 // pred_check
      %p1752 = pneg %p1751
    $region58: #{conv_ffn.1} parent=5 // pred_check_branch
      %1754 = sbr.rel (%p1752) target = $region60
    $region59: #{conv_ffn.1} parent=5 // pred_region
      %s1755 = ssub.s32 %s14, 2
      // Predicated region
      $region61: #{conv_ffn.1} parent=59 // pred_check
        %p1756 = pneg %p216
      $region62: #{conv_ffn.1} parent=59 // pred_check_branch
        %1758 = sbr.rel (%p1756) target = $region64
      $region63: #{conv_ffn.1} parent=59 // pred_region
        %p1759 = scmp.lt.s32.totalorder %s20, 1
        %s1760 = scalar_select %p1759, %s20, 1
        %s1761 = smul.addr %s1760, 4
        %s1762 = smul.addr %s1761, 8
        %s1763 = scalar_lea.vmem %s8, %s1762
      $region64: #{conv_ffn.1} parent=59 // pred_fallthru
        _
    $region60: #{conv_ffn.1} parent=5 // pred_fallthru
      _
  $region6: #{conv_ffn.1} parent=0 // loop_footer
    %s18 = sadd.s32 1, %s14
  $region7: #{conv_ffn.1} parent=0 // loop_footer_branch
    %13 = sbr.rel target = $region3
  $region8: #{conv_ffn.1} parent=0 // loop_exit
    _

</llo_original>
